<compile_context>
chip_gen: v7x
topology: tpu7x:2x2x1
jax: 0.10.0
libtpu: 0.0.40
codegen_flags: <defaults>
</compile_context>

<pallas_src>
import jax
import jax.numpy as jnp
from jax.experimental import pallas as pl
from jax.experimental.pallas import tpu as pltpu

D_BASE = 384   # MiniLM sentence-embedding dim
D_OUT = 768    # projection / MLP dim


# ----------------------------------------------------------------------------
# Pallas kernel: fused (folded) head
#   h = relu(x @ Wf + bf)      (384 -> 768)   Wf = Wp @ W1, bf = bp @ W1 + b1
#   y = h @ W2 + b2            (768 -> 768)
# ----------------------------------------------------------------------------
def _head_kernel(x_ref, wf_ref, bf_ref, w2_ref, b2_ref, o_ref):
    x = x_ref[...]                                                    # [TB,384] bf16
    h = jnp.dot(x, wf_ref[...], preferred_element_type=jnp.float32)   # MXU bf16->f32
    h = jnp.maximum(h + bf_ref[...], 0.0)                             # bias+ReLU in f32
    # Dropout(0.1) is identity in eval mode.
    # TODO(synk): training-mode dropout would use pltpu.prng_seed / prng_random_bits.
    y = jnp.dot(h.astype(jnp.bfloat16), w2_ref[...],
                preferred_element_type=jnp.float32)                   # [TB,768] f32
    o_ref[...] = y + b2_ref[...]


def query_embedding_head(base_embeddings, params, tb=None):
    """base_embeddings: [B, 384] f32 -> [B, 768] f32 via the fused Pallas head."""
    B = base_embeddings.shape[0]
    if tb is None:
        # 256-row tiles feed the MXU well on v6e/v7x; for tiny batches just
        # round up to the 8-sublane granule instead of padding to 256.
        tb = 256 if B >= 256 else max(8, ((B + 7) // 8) * 8)
    bp_pad = ((B + tb - 1) // tb) * tb                                # padded batch

    # Exact offline fold of projection + first MLP linear (no nonlinearity
    # between them):  (x@Wp + bp)@W1 + b1 == x@(Wp@W1) + (bp@W1 + b1)
    wf = jnp.dot(params["wp"], params["w1"], preferred_element_type=jnp.float32)
    bf = jnp.dot(params["bp"], params["w1"],
                 preferred_element_type=jnp.float32) + params["b1"]

    wf_bf16 = wf.astype(jnp.bfloat16)                                 # [384,768]
    w2_bf16 = params["w2"].astype(jnp.bfloat16)                       # [768,768]

    x = base_embeddings.astype(jnp.bfloat16)
    if bp_pad != B:
        x = jnp.pad(x, ((0, bp_pad - B), (0, 0)))

    grid = (bp_pad // tb,)
    flops = 2 * bp_pad * D_OUT * (D_BASE + D_OUT)
    bytes_accessed = ((D_BASE * D_OUT + D_OUT * D_OUT) * 2            # bf16 weights
                      + 2 * D_OUT * 4                                 # f32 biases
                      + bp_pad * D_BASE * 2                           # bf16 x
                      + bp_pad * D_OUT * 4)                           # f32 out

    out = pl.pallas_call(
        _head_kernel,
        out_shape=jax.ShapeDtypeStruct((bp_pad, D_OUT), jnp.float32),
        grid_spec=pltpu.PrefetchScalarGridSpec(
            num_scalar_prefetch=0,
            grid=grid,
            in_specs=[
                pl.BlockSpec((tb, D_BASE), lambda i: (i, 0)),     # x tile (pipelined)
                pl.BlockSpec((D_BASE, D_OUT), lambda i: (0, 0)),  # Wf  (resident)
                pl.BlockSpec((1, D_OUT), lambda i: (0, 0)),       # bf  (resident)
                pl.BlockSpec((D_OUT, D_OUT), lambda i: (0, 0)),   # W2  (resident)
                pl.BlockSpec((1, D_OUT), lambda i: (0, 0)),       # b2  (resident)
            ],
            out_specs=pl.BlockSpec((tb, D_OUT), lambda i: (i, 0)),
        ),
        compiler_params=pltpu.CompilerParams(
            dimension_semantics=("parallel",)),                   # megacore on v7x
        cost_estimate=pl.CostEstimate(
            flops=flops, transcendentals=0, bytes_accessed=bytes_accessed),
    )(x, wf_bf16, bf, w2_bf16, params["b2"])

    return out[:B]


# ----------------------------------------------------------------------------
# Deterministic parameter construction (shapes from the PyTorch __init__)
# ----------------------------------------------------------------------------
def make_params(key):
    k = jax.random.split(key, 8)
    scale_p = 1.0 / jnp.sqrt(float(D_BASE))
    scale_h = 1.0 / jnp.sqrt(float(D_OUT))
    return {
        # projection: Linear(384, 768)   -> stored as [384, 768]
        "wp": jax.random.uniform(k[0], (D_BASE, D_OUT), jnp.float32, -scale_p, scale_p),
        "bp": jax.random.uniform(k[1], (1, D_OUT), jnp.float32, -scale_p, scale_p),
        # mlp[0]: Linear(768, 768)
        "w1": jax.random.uniform(k[2], (D_OUT, D_OUT), jnp.float32, -scale_h, scale_h),
        "b1": jax.random.uniform(k[3], (1, D_OUT), jnp.float32, -scale_h, scale_h),
        # mlp[3]: Linear(768, 768)
        "w2": jax.random.uniform(k[4], (D_OUT, D_OUT), jnp.float32, -scale_h, scale_h),
        "b2": jax.random.uniform(k[5], (1, D_OUT), jnp.float32, -scale_h, scale_h),
        # frozen base-model stand-in: token embedding table [vocab, 384]
        "tok_emb": jax.random.normal(k[6], (100, D_BASE), jnp.float32) * 0.02,
    }


def base_model_standin(params, input_ids, attention_mask):
    """Frozen-base stand-in: embedding lookup + masked mean pooling -> [B, 384].
    TODO(synk): the real MiniLM transformer encoder is not translated."""
    tok = params["tok_emb"][input_ids]                       # [B, S, 384]
    mask = attention_mask.astype(jnp.float32)[..., None]     # [B, S, 1]
    summed = jnp.sum(tok * mask, axis=1)                     # [B, 384]
    denom = jnp.clip(jnp.sum(mask, axis=1), 1e-9, None)      # [B, 1]
    return summed / denom


def query_embedding_forward(params, input_ids, attention_mask):
    base_embeddings = base_model_standin(params, input_ids, attention_mask)
    return query_embedding_head(base_embeddings, params)


# ----------------------------------------------------------------------------
if __name__ == "__main__":
    key = jax.random.PRNGKey(0)
    params = make_params(key)

    # small deterministic example inputs: batch=8, seq=8
    B, S = 8, 8
    k_ids, _ = jax.random.split(jax.random.PRNGKey(0), 2)
    input_ids = jax.random.randint(k_ids, (B, S), 0, 100, dtype=jnp.int32)
    lengths = jnp.array([8, 8, 7, 6, 5, 4, 3, 2], dtype=jnp.int32)
    attention_mask = (jnp.arange(S)[None, :] < lengths[:, None]).astype(jnp.int32)

    out = query_embedding_forward(params, input_ids, attention_mask)
    out = jax.block_until_ready(out)

    # sanity check against a pure-JAX f32 reference of the (unfolded) head
    base = base_model_standin(params, input_ids, attention_mask)
    ref = base @ params["wp"] + params["bp"]
    ref = jnp.maximum(ref @ params["w1"] + params["b1"], 0.0)
    ref = ref @ params["w2"] + params["b2"]
    assert out.shape == (B, D_OUT)
    rel_err = jnp.max(jnp.abs(out - ref)) / (jnp.max(jnp.abs(ref)) + 1e-9)
    assert rel_err < 2e-2, f"relative error too high: {rel_err}"

    print("KERNEL_OK")
</pallas_src>

<mosaic_0001>
module attributes {stable_mosaic.version = 11 : i64} {
  func.func @_head_kernel(%arg0: i32, %arg1: memref<8x384xbf16, #tpu.memory_space<vmem>>, %arg2: memref<384x768xbf16, #tpu.memory_space<vmem>>, %arg3: memref<1x768xf32, #tpu.memory_space<vmem>>, %arg4: memref<768x768xbf16, #tpu.memory_space<vmem>>, %arg5: memref<1x768xf32, #tpu.memory_space<vmem>>, %arg6: memref<8x768xf32, #tpu.memory_space<vmem>>) attributes {dimension_semantics = [#tpu.dimension_semantics<parallel>], iteration_bounds = array<i64: 1>, scalar_prefetch = 0 : i64, scratch_operands = 0 : i64, tpu.core_type = #tpu.core_type<tc>, window_params = [{transform_indices = @transform_0, window_bounds = array<i64: 8, 384>}, {pipeline_mode = #tpu.pipeline_mode<synchronous>, transform_indices = @transform_1, window_bounds = array<i64: 384, 768>}, {pipeline_mode = #tpu.pipeline_mode<synchronous>, transform_indices = @transform_2, window_bounds = array<i64: 1, 768>}, {pipeline_mode = #tpu.pipeline_mode<synchronous>, transform_indices = @transform_3, window_bounds = array<i64: 768, 768>}, {pipeline_mode = #tpu.pipeline_mode<synchronous>, transform_indices = @transform_4, window_bounds = array<i64: 1, 768>}, {transform_indices = @transform_5, window_bounds = array<i64: 8, 768>}]} {
    %c0 = arith.constant 0 : index
    %c0_0 = arith.constant 0 : index
    %0 = vector.load %arg1[%c0, %c0_0] : memref<8x384xbf16, #tpu.memory_space<vmem>>, vector<8x384xbf16>
    %c0_1 = arith.constant 0 : index
    %c0_2 = arith.constant 0 : index
    %1 = vector.load %arg2[%c0_1, %c0_2] : memref<384x768xbf16, #tpu.memory_space<vmem>>, vector<384x768xbf16>
    %cst = arith.constant dense<0.000000e+00> : vector<8x768xf32>
    %2 = tpu.matmul %0, %1, %cst {dimension_numbers = #tpu.dot_dimension_numbers<[1], [0], [0], [1], [0, 0, 1, 1], [], []>} : vector<8x384xbf16>, vector<384x768xbf16>, vector<8x768xf32> -> vector<8x768xf32>
    %c0_3 = arith.constant 0 : index
    %c0_4 = arith.constant 0 : index
    %3 = vector.load %arg3[%c0_3, %c0_4] : memref<1x768xf32, #tpu.memory_space<vmem>>, vector<1x768xf32>
    %4 = vector.broadcast %3 : vector<1x768xf32> to vector<8x768xf32>
    %5 = arith.addf %2, %4 : vector<8x768xf32>
    %cst_5 = arith.constant 0.000000e+00 : f32
    %6 = vector.broadcast %cst_5 : f32 to vector<8x768xf32>
    %7 = arith.maximumf %5, %6 : vector<8x768xf32>
    %8 = arith.truncf %7 : vector<8x768xf32> to vector<8x768xbf16>
    %c0_6 = arith.constant 0 : index
    %c0_7 = arith.constant 0 : index
    %9 = vector.load %arg4[%c0_6, %c0_7] : memref<768x768xbf16, #tpu.memory_space<vmem>>, vector<768x768xbf16>
    %cst_8 = arith.constant dense<0.000000e+00> : vector<8x768xf32>
    %10 = tpu.matmul %8, %9, %cst_8 {dimension_numbers = #tpu.dot_dimension_numbers<[1], [0], [0], [1], [0, 0, 1, 1], [], []>} : vector<8x768xbf16>, vector<768x768xbf16>, vector<8x768xf32> -> vector<8x768xf32>
    %c0_9 = arith.constant 0 : index
    %c0_10 = arith.constant 0 : index
    %11 = vector.load %arg5[%c0_9, %c0_10] : memref<1x768xf32, #tpu.memory_space<vmem>>, vector<1x768xf32>
    %12 = vector.broadcast %11 : vector<1x768xf32> to vector<8x768xf32>
    %13 = arith.addf %10, %12 : vector<8x768xf32>
    %c0_11 = arith.constant 0 : index
    %c0_12 = arith.constant 0 : index
    %14 = vector.load %arg6[%c0_11, %c0_12] : memref<8x768xf32, #tpu.memory_space<vmem>>, vector<8x768xf32>
    tpu.vector_store %arg6[%c0_11, %c0_12], %13 {strides = array<i32>} : memref<8x768xf32, #tpu.memory_space<vmem>>, vector<8x768xf32>,
    return
  }
  func.func @transform_0(%arg0: i32) -> (i32, i32) {
    %c0_i32 = arith.constant 0 : i32
    %c0_i32_0 = arith.constant 0 : i32
    return %arg0, %c0_i32 : i32, i32
  }
  func.func @transform_1(%arg0: i32) -> (i32, i32) {
    %c0_i32 = arith.constant 0 : i32
    %c0_i32_0 = arith.constant 0 : i32
    %c0_i32_1 = arith.constant 0 : i32
    return %c0_i32, %c0_i32_0 : i32, i32
  }
  func.func @transform_2(%arg0: i32) -> (i32, i32) {
    %c0_i32 = arith.constant 0 : i32
    %c0_i32_0 = arith.constant 0 : i32
    %c0_i32_1 = arith.constant 0 : i32
    return %c0_i32, %c0_i32_0 : i32, i32
  }
  func.func @transform_3(%arg0: i32) -> (i32, i32) {
    %c0_i32 = arith.constant 0 : i32
    %c0_i32_0 = arith.constant 0 : i32
    %c0_i32_1 = arith.constant 0 : i32
    return %c0_i32, %c0_i32_0 : i32, i32
  }
  func.func @transform_4(%arg0: i32) -> (i32, i32) {
    %c0_i32 = arith.constant 0 : i32
    %c0_i32_0 = arith.constant 0 : i32
    %c0_i32_1 = arith.constant 0 : i32
    return %c0_i32, %c0_i32_0 : i32, i32
  }
  func.func @transform_5(%arg0: i32) -> (i32, i32) {
    %c0_i32 = arith.constant 0 : i32
    %c0_i32_0 = arith.constant 0 : i32
    return %arg0, %c0_i32 : i32, i32
  }
}

</mosaic_0001>

<llo_original>
// kernel: tpu_custom_call.1
$region0: #{tpu_custom_call.1}
  #allocation0 [shape = 'u32[]', space=smem, size = 0x4, offset = 0x4, fixed_abs, tag = 'smem constant byte address 0x4 - core index']
  #allocation1 [shape = 'u32[144,128]{1,0:T(1,128)}', space=vmem, size = 0x12000, scoped, tag = 'internal scratch']
  %s0 = inlined_call_operand.hbm [shape: bf16[8,384], index: 0, kind: input, shape index: {}]
  %s1 = inlined_call_operand.hbm [shape: bf16[384,768], index: 1, kind: input, shape index: {}]
  %s2 = inlined_call_operand.hbm [shape: f32[1,768], index: 2, kind: input, shape index: {}]
  %s3 = inlined_call_operand.hbm [shape: bf16[768,768], index: 3, kind: input, shape index: {}]
  %s4 = inlined_call_operand.hbm [shape: f32[1,768], index: 4, kind: input, shape index: {}]
  %s5 = inlined_call_operand.hbm [shape: f32[8,768], index: 5, kind: output, shape index: {}]
  %s6 = sld [smem:[#allocation0]]
  $region50: #{tpu_custom_call.1} parent=0
    _
  %s8 = ssub.s32 1, %s6
  %s9 = scalar_select 0, %s8, %s6
  $region1: #{tpu_custom_call.1} parent=0
    #allocation2 [shape = 'u8[6144]{0}', space=vmem, size = 0x1800, scoped, tag = 'input window, operand 0, single buffered']
    #allocation3 [shape = 's32[1]{0}', space=sflag, size = 0x4, scoped, tag = 'scoped memory for tpu_custom_call.1']
    #allocation4 [shape = 's32[1]{0}', space=sflag, size = 0x4, scoped, tag = 'scoped memory for tpu_custom_call.1']
    #allocation5 [shape = 'u8[589824]{0}', space=vmem, size = 0x90000, scoped, tag = 'input window, operand 1, single buffered']
    #allocation6 [shape = 's32[1]{0}', space=sflag, size = 0x4, scoped, tag = 'scoped memory for tpu_custom_call.1']
    #allocation7 [shape = 'u8[3072]{0}', space=vmem, size = 0xc00, scoped, tag = 'input window, operand 2, single buffered']
    #allocation8 [shape = 'u8[1179648]{0}', space=vmem, size = 0x120000, scoped, tag = 'input window, operand 3, single buffered']
    #allocation9 [shape = 's32[1]{0}', space=sflag, size = 0x4, scoped, tag = 'scoped memory for tpu_custom_call.1']
    #allocation10 [shape = 'u8[3072]{0}', space=vmem, size = 0xc00, scoped, tag = 'input window, operand 4, single buffered']
    #allocation11 [shape = 'u8[24576]{0}', space=vmem, size = 0x6000, scoped, tag = 'output window, operand 0, single buffered']
    %10 = vsyncpa [#allocation3], 0
    %11 = vsyncpa [#allocation6], 0
    %12 = vsyncpa [#allocation9], 0
    %13 = vsyncpa [#allocation4], 0
    // Predicated region
    $region2: #{tpu_custom_call.1} parent=1 // pred_check
      _
    $region3: #{tpu_custom_call.1} parent=1 // pred_check_branch
      %15 = sbr.rel (0) target = $region5
    $region4: #{tpu_custom_call.1} parent=1 // pred_region
      %s17 = ssub.s32 192, 192
      %18 = vsyncadd [#allocation3], %s17
      %s20 = sshll.u32 [#allocation2], 4
      %s21 = int_to_ptr.vmem [resolvable:$true] %s20
      %23 = dma.hbm_to_vmem [thread:$0]  %s0, 192, %s21, [#allocation3]
    $region5: #{tpu_custom_call.1} parent=1 // pred_fallthru
      _
    // Predicated region
    $region6: #{tpu_custom_call.1} parent=1 // pred_check
      _
    $region7: #{tpu_custom_call.1} parent=1 // pred_check_branch
      %25 = sbr.rel (0) target = $region9
    $region8: #{tpu_custom_call.1} parent=1 // pred_region
      %s27 = ssub.s32 18432, 18432
      %28 = vsyncadd [#allocation6], %s27
      %s29 = sshll.u32 [#allocation5], 4
      %s30 = int_to_ptr.vmem [resolvable:$true] %s29
      %35 = dma.hbm_to_vmem [thread:$0]  %s1, 18432, %s30, [#allocation6], 384, 384, 24
    $region9: #{tpu_custom_call.1} parent=1 // pred_fallthru
      _
    // Predicated region
    $region10: #{tpu_custom_call.1} parent=1 // pred_check
      _
    $region11: #{tpu_custom_call.1} parent=1 // pred_check_branch
      %37 = sbr.rel (0) target = $region13
    $region12: #{tpu_custom_call.1} parent=1 // pred_region
      %s39 = ssub.s32 96, 96
      %40 = vsyncadd [#allocation6], %s39
      %s42 = sshll.u32 [#allocation7], 4
      %s43 = int_to_ptr.vmem [resolvable:$true] %s42
      %45 = dma.hbm_to_vmem [thread:$0]  %s2, 96, %s43, [#allocation6]
    $region13: #{tpu_custom_call.1} parent=1 // pred_fallthru
      _
    // Predicated region
    $region14: #{tpu_custom_call.1} parent=1 // pred_check
      _
    $region15: #{tpu_custom_call.1} parent=1 // pred_check_branch
      %47 = sbr.rel (0) target = $region17
    $region16: #{tpu_custom_call.1} parent=1 // pred_region
      %s49 = ssub.s32 36864, 36864
      %50 = vsyncadd [#allocation9], %s49
      %s51 = sshll.u32 [#allocation8], 4
      %s52 = int_to_ptr.vmem [resolvable:$true] %s51
      %57 = dma.hbm_to_vmem [thread:$0]  %s3, 36864, %s52, [#allocation9], 384, 384, 24
    $region17: #{tpu_custom_call.1} parent=1 // pred_fallthru
      _
    // Predicated region
    $region18: #{tpu_custom_call.1} parent=1 // pred_check
      _
    $region19: #{tpu_custom_call.1} parent=1 // pred_check_branch
      %59 = sbr.rel (0) target = $region21
    $region20: #{tpu_custom_call.1} parent=1 // pred_region
      %s61 = ssub.s32 96, 96
      %62 = vsyncadd [#allocation9], %s61
      %s64 = sshll.u32 [#allocation10], 4
      %s65 = int_to_ptr.vmem [resolvable:$true] %s64
      %67 = dma.hbm_to_vmem [thread:$0]  %s4, 96, %s65, [#allocation9]
    $region21: #{tpu_custom_call.1} parent=1 // pred_fallthru
      _
    // Predicated region
    $region22: #{tpu_custom_call.1} parent=1 // pred_check
      _
    $region23: #{tpu_custom_call.1} parent=1 // pred_check_branch
      %69 = sbr.rel (0) target = $region25
    $region24: #{tpu_custom_call.1} parent=1 // pred_region
      %70 = dma.done [#allocation3], 192
    $region25: #{tpu_custom_call.1} parent=1 // pred_fallthru
      _
    // Predicated region
    $region26: #{tpu_custom_call.1} parent=1 // pred_check
      _
    $region27: #{tpu_custom_call.1} parent=1 // pred_check_branch
      %72 = sbr.rel (0) target = $region29
    $region28: #{tpu_custom_call.1} parent=1 // pred_region
      %73 = dma.done [#allocation6], 18432
    $region29: #{tpu_custom_call.1} parent=1 // pred_fallthru
      _
    // Predicated region
    $region30: #{tpu_custom_call.1} parent=1 // pred_check
      _
    $region31: #{tpu_custom_call.1} parent=1 // pred_check_branch
      %75 = sbr.rel (0) target = $region33
    $region32: #{tpu_custom_call.1} parent=1 // pred_region
      %76 = dma.done [#allocation6], 96
    $region33: #{tpu_custom_call.1} parent=1 // pred_fallthru
      _
    // Predicated region
    $region34: #{tpu_custom_call.1} parent=1 // pred_check
      _
    $region35: #{tpu_custom_call.1} parent=1 // pred_check_branch
      %78 = sbr.rel (0) target = $region37
    $region36: #{tpu_custom_call.1} parent=1 // pred_region
      %79 = dma.done [#allocation9], 36864
    $region37: #{tpu_custom_call.1} parent=1 // pred_fallthru
      _
    // Predicated region
    $region38: #{tpu_custom_call.1} parent=1 // pred_check
      _
    $region39: #{tpu_custom_call.1} parent=1 // pred_check_branch
      %81 = sbr.rel (0) target = $region41
    $region40: #{tpu_custom_call.1} parent=1 // pred_region
      %82 = dma.done [#allocation9], 96
    $region41: #{tpu_custom_call.1} parent=1 // pred_fallthru
      _
    %v84 = vld [vmem:[#allocation2] sm:$0xff]
    %v85 = vld [vmem:[#allocation2 + $0x8] sm:$0xf]
    %v86 = vld [vmem:[#allocation5] sm:$0xff]
    %v87 = vld [vmem:[#allocation5 + $0x8] sm:$0xff]
    %v88 = vld [vmem:[#allocation5 + $0x10] sm:$0xff]
    %v89 = vld [vmem:[#allocation5 + $0x18] sm:$0xff]
    %v90 = vld [vmem:[#allocation5 + $0x20] sm:$0xff]
    %v91 = vld [vmem:[#allocation5 + $0x28] sm:$0xff]
    %v92 = vld [vmem:[#allocation5 + $0x30] sm:$0xff]
    %v93 = vld [vmem:[#allocation5 + $0x38] sm:$0xff]
    %v94 = vld [vmem:[#allocation5 + $0x40] sm:$0xff]
    %v95 = vld [vmem:[#allocation5 + $0x48] sm:$0xff]
    %v96 = vld [vmem:[#allocation5 + $0x50] sm:$0xff]
    %v97 = vld [vmem:[#allocation5 + $0x58] sm:$0xff]
    %v98 = vld [vmem:[#allocation5 + $0x60] sm:$0xff]
    %v99 = vld [vmem:[#allocation5 + $0x68] sm:$0xff]
    %v100 = vld [vmem:[#allocation5 + $0x70] sm:$0xff]
    %v101 = vld [vmem:[#allocation5 + $0x78] sm:$0xff]
    %v102 = vld [vmem:[#allocation5 + $0x80] sm:$0xff]
    %v103 = vld [vmem:[#allocation5 + $0x88] sm:$0xff]
    %v104 = vld [vmem:[#allocation5 + $0x90] sm:$0xff]
    %v105 = vld [vmem:[#allocation5 + $0x98] sm:$0xff]
    %v106 = vld [vmem:[#allocation5 + $0xa0] sm:$0xff]
    %v107 = vld [vmem:[#allocation5 + $0xa8] sm:$0xff]
    %v108 = vld [vmem:[#allocation5 + $0xb0] sm:$0xff]
    %v109 = vld [vmem:[#allocation5 + $0xb8] sm:$0xff]
    %v110 = vld [vmem:[#allocation5 + $0xc0] sm:$0xff]
    %v111 = vld [vmem:[#allocation5 + $0xc8] sm:$0xff]
    %v112 = vld [vmem:[#allocation5 + $0xd0] sm:$0xff]
    %v113 = vld [vmem:[#allocation5 + $0xd8] sm:$0xff]
    %v114 = vld [vmem:[#allocation5 + $0xe0] sm:$0xff]
    %v115 = vld [vmem:[#allocation5 + $0xe8] sm:$0xff]
    %v116 = vld [vmem:[#allocation5 + $0xf0] sm:$0xff]
    %v117 = vld [vmem:[#allocation5 + $0xf8] sm:$0xff]
    %v118 = vld [vmem:[#allocation5 + $0x100] sm:$0xff]
    %v119 = vld [vmem:[#allocation5 + $0x108] sm:$0xff]
    %v120 = vld [vmem:[#allocation5 + $0x110] sm:$0xff]
    %v121 = vld [vmem:[#allocation5 + $0x118] sm:$0xff]
    %v122 = vld [vmem:[#allocation5 + $0x120] sm:$0xff]
    %v123 = vld [vmem:[#allocation5 + $0x128] sm:$0xff]
    %v124 = vld [vmem:[#allocation5 + $0x130] sm:$0xff]
    %v125 = vld [vmem:[#allocation5 + $0x138] sm:$0xff]
    %v126 = vld [vmem:[#allocation5 + $0x140] sm:$0xff]
    %v127 = vld [vmem:[#allocation5 + $0x148] sm:$0xff]
    %v128 = vld [vmem:[#allocation5 + $0x150] sm:$0xff]
    %v129 = vld [vmem:[#allocation5 + $0x158] sm:$0xff]
    %v130 = vld [vmem:[#allocation5 + $0x160] sm:$0xff]
    %v131 = vld [vmem:[#allocation5 + $0x168] sm:$0xff]
    %v132 = vld [vmem:[#allocation5 + $0x170] sm:$0xff]
    %v133 = vld [vmem:[#allocation5 + $0x178] sm:$0xff]
    %v134 = vld [vmem:[#allocation5 + $0x180] sm:$0xff]
    %v135 = vld [vmem:[#allocation5 + $0x188] sm:$0xff]
    %v136 = vld [vmem:[#allocation5 + $0x190] sm:$0xff]
    %v137 = vld [vmem:[#allocation5 + $0x198] sm:$0xff]
    %v138 = vld [vmem:[#allocation5 + $0x1a0] sm:$0xff]
    %v139 = vld [vmem:[#allocation5 + $0x1a8] sm:$0xff]
    %v140 = vld [vmem:[#allocation5 + $0x1b0] sm:$0xff]
    %v141 = vld [vmem:[#allocation5 + $0x1b8] sm:$0xff]
    %v142 = vld [vmem:[#allocation5 + $0x1c0] sm:$0xff]
    %v143 = vld [vmem:[#allocation5 + $0x1c8] sm:$0xff]
    %v144 = vld [vmem:[#allocation5 + $0x1d0] sm:$0xff]
    %v145 = vld [vmem:[#allocation5 + $0x1d8] sm:$0xff]
    %v146 = vld [vmem:[#allocation5 + $0x1e0] sm:$0xff]
    %v147 = vld [vmem:[#allocation5 + $0x1e8] sm:$0xff]
    %v148 = vld [vmem:[#allocation5 + $0x1f0] sm:$0xff]
    %v149 = vld [vmem:[#allocation5 + $0x1f8] sm:$0xff]
    %v150 = vld [vmem:[#allocation5 + $0x200] sm:$0xff]
    %v151 = vld [vmem:[#allocation5 + $0x208] sm:$0xff]
    %v152 = vld [vmem:[#allocation5 + $0x210] sm:$0xff]
    %v153 = vld [vmem:[#allocation5 + $0x218] sm:$0xff]
    %v154 = vld [vmem:[#allocation5 + $0x220] sm:$0xff]
    %v155 = vld [vmem:[#allocation5 + $0x228] sm:$0xff]
    %v156 = vld [vmem:[#allocation5 + $0x230] sm:$0xff]
    %v157 = vld [vmem:[#allocation5 + $0x238] sm:$0xff]
    %v158 = vld [vmem:[#allocation5 + $0x240] sm:$0xff]
    %v159 = vld [vmem:[#allocation5 + $0x248] sm:$0xff]
    %v160 = vld [vmem:[#allocation5 + $0x250] sm:$0xff]
    %v161 = vld [vmem:[#allocation5 + $0x258] sm:$0xff]
    %v162 = vld [vmem:[#allocation5 + $0x260] sm:$0xff]
    %v163 = vld [vmem:[#allocation5 + $0x268] sm:$0xff]
    %v164 = vld [vmem:[#allocation5 + $0x270] sm:$0xff]
    %v165 = vld [vmem:[#allocation5 + $0x278] sm:$0xff]
    %v166 = vld [vmem:[#allocation5 + $0x280] sm:$0xff]
    %v167 = vld [vmem:[#allocation5 + $0x288] sm:$0xff]
    %v168 = vld [vmem:[#allocation5 + $0x290] sm:$0xff]
    %v169 = vld [vmem:[#allocation5 + $0x298] sm:$0xff]
    %v170 = vld [vmem:[#allocation5 + $0x2a0] sm:$0xff]
    %v171 = vld [vmem:[#allocation5 + $0x2a8] sm:$0xff]
    %v172 = vld [vmem:[#allocation5 + $0x2b0] sm:$0xff]
    %v173 = vld [vmem:[#allocation5 + $0x2b8] sm:$0xff]
    %v174 = vld [vmem:[#allocation5 + $0x2c0] sm:$0xff]
    %v175 = vld [vmem:[#allocation5 + $0x2c8] sm:$0xff]
    %v176 = vld [vmem:[#allocation5 + $0x2d0] sm:$0xff]
    %v177 = vld [vmem:[#allocation5 + $0x2d8] sm:$0xff]
    %v178 = vld [vmem:[#allocation5 + $0x2e0] sm:$0xff]
    %v179 = vld [vmem:[#allocation5 + $0x2e8] sm:$0xff]
    %v180 = vld [vmem:[#allocation5 + $0x2f0] sm:$0xff]
    %v181 = vld [vmem:[#allocation5 + $0x2f8] sm:$0xff]
    %v182 = vld [vmem:[#allocation5 + $0x300] sm:$0xff]
    %v183 = vld [vmem:[#allocation5 + $0x308] sm:$0xff]
    %v184 = vld [vmem:[#allocation5 + $0x310] sm:$0xff]
    %v185 = vld [vmem:[#allocation5 + $0x318] sm:$0xff]
    %v186 = vld [vmem:[#allocation5 + $0x320] sm:$0xff]
    %v187 = vld [vmem:[#allocation5 + $0x328] sm:$0xff]
    %v188 = vld [vmem:[#allocation5 + $0x330] sm:$0xff]
    %v189 = vld [vmem:[#allocation5 + $0x338] sm:$0xff]
    %v190 = vld [vmem:[#allocation5 + $0x340] sm:$0xff]
    %v191 = vld [vmem:[#allocation5 + $0x348] sm:$0xff]
    %v192 = vld [vmem:[#allocation5 + $0x350] sm:$0xff]
    %v193 = vld [vmem:[#allocation5 + $0x358] sm:$0xff]
    %v194 = vld [vmem:[#allocation5 + $0x360] sm:$0xff]
    %v195 = vld [vmem:[#allocation5 + $0x368] sm:$0xff]
    %v196 = vld [vmem:[#allocation5 + $0x370] sm:$0xff]
    %v197 = vld [vmem:[#allocation5 + $0x378] sm:$0xff]
    %v198 = vld [vmem:[#allocation5 + $0x380] sm:$0xff]
    %v199 = vld [vmem:[#allocation5 + $0x388] sm:$0xff]
    %v200 = vld [vmem:[#allocation5 + $0x390] sm:$0xff]
    %v201 = vld [vmem:[#allocation5 + $0x398] sm:$0xff]
    %v202 = vld [vmem:[#allocation5 + $0x3a0] sm:$0xff]
    %v203 = vld [vmem:[#allocation5 + $0x3a8] sm:$0xff]
    %v204 = vld [vmem:[#allocation5 + $0x3b0] sm:$0xff]
    %v205 = vld [vmem:[#allocation5 + $0x3b8] sm:$0xff]
    %v206 = vld [vmem:[#allocation5 + $0x3c0] sm:$0xff]
    %v207 = vld [vmem:[#allocation5 + $0x3c8] sm:$0xff]
    %v208 = vld [vmem:[#allocation5 + $0x3d0] sm:$0xff]
    %v209 = vld [vmem:[#allocation5 + $0x3d8] sm:$0xff]
    %v210 = vld [vmem:[#allocation5 + $0x3e0] sm:$0xff]
    %v211 = vld [vmem:[#allocation5 + $0x3e8] sm:$0xff]
    %v212 = vld [vmem:[#allocation5 + $0x3f0] sm:$0xff]
    %v213 = vld [vmem:[#allocation5 + $0x3f8] sm:$0xff]
    %v214 = vld [vmem:[#allocation5 + $0x400] sm:$0xff]
    %v215 = vld [vmem:[#allocation5 + $0x408] sm:$0xff]
    %v216 = vld [vmem:[#allocation5 + $0x410] sm:$0xff]
    %v217 = vld [vmem:[#allocation5 + $0x418] sm:$0xff]
    %v218 = vld [vmem:[#allocation5 + $0x420] sm:$0xff]
    %v219 = vld [vmem:[#allocation5 + $0x428] sm:$0xff]
    %v220 = vld [vmem:[#allocation5 + $0x430] sm:$0xff]
    %v221 = vld [vmem:[#allocation5 + $0x438] sm:$0xff]
    %v222 = vld [vmem:[#allocation5 + $0x440] sm:$0xff]
    %v223 = vld [vmem:[#allocation5 + $0x448] sm:$0xff]
    %v224 = vld [vmem:[#allocation5 + $0x450] sm:$0xff]
    %v225 = vld [vmem:[#allocation5 + $0x458] sm:$0xff]
    %v226 = vld [vmem:[#allocation5 + $0x460] sm:$0xff]
    %v227 = vld [vmem:[#allocation5 + $0x468] sm:$0xff]
    %v228 = vld [vmem:[#allocation5 + $0x470] sm:$0xff]
    %v229 = vld [vmem:[#allocation5 + $0x478] sm:$0xff]
    %v230 = vld [vmem:[#allocation7] sm:$0x3f]
    %v232 = vlaneseq
    %v233 = vshrl.u32 %v232, 7
    %v234 = vsub.s32 0, %v233
    %v235 = vrot.slane %v230, %v234
    %v236 = vlaneseq
    %v237 = vshrl.u32 %v236, 7
    %v238 = vsub.s32 1, %v237
    %v239 = vrot.slane %v230, %v238
    %v240 = vlaneseq
    %v241 = vshrl.u32 %v240, 7
    %v242 = vsub.s32 2, %v241
    %v243 = vrot.slane %v230, %v242
    %v244 = vlaneseq
    %v245 = vshrl.u32 %v244, 7
    %v246 = vsub.s32 3, %v245
    %v247 = vrot.slane %v230, %v246
    %v248 = vlaneseq
    %v249 = vshrl.u32 %v248, 7
    %v250 = vsub.s32 4, %v249
    %v251 = vrot.slane %v230, %v250
    %v252 = vlaneseq
    %v253 = vshrl.u32 %v252, 7
    %v254 = vsub.s32 5, %v253
    %v255 = vrot.slane %v230, %v254
    %v264 = vunpack.c.l.b16 %v84
    %v265 = vunpack.c.h.b16 %v84
    %v266 = vunpack.c.l.b16 %v85
    %v267 = vpack.c.b16 %v264, %v264
    %v268 = vpack.c.b16 %v265, %v265
    %v269 = vpack.c.b16 %v266, %v266
    %v417 = vunpack.c.l.b16 %v86
    %v418 = vunpack.c.h.b16 %v86
    %v419 = vunpack.c.l.b16 %v87
    %v420 = vunpack.c.h.b16 %v87
    %v421 = vunpack.c.l.b16 %v88
    %v422 = vunpack.c.h.b16 %v88
    %v423 = vunpack.c.l.b16 %v89
    %v424 = vunpack.c.h.b16 %v89
    %v425 = vunpack.c.l.b16 %v90
    %v426 = vunpack.c.h.b16 %v90
    %v427 = vunpack.c.l.b16 %v91
    %v428 = vunpack.c.h.b16 %v91
    %v429 = vunpack.c.l.b16 %v92
    %v430 = vunpack.c.h.b16 %v92
    %v431 = vunpack.c.l.b16 %v93
    %v432 = vunpack.c.h.b16 %v93
    %v433 = vunpack.c.l.b16 %v94
    %v434 = vunpack.c.h.b16 %v94
    %v435 = vunpack.c.l.b16 %v95
    %v436 = vunpack.c.h.b16 %v95
    %v437 = vunpack.c.l.b16 %v96
    %v438 = vunpack.c.h.b16 %v96
    %v439 = vunpack.c.l.b16 %v97
    %v440 = vunpack.c.h.b16 %v97
    %v441 = vunpack.c.l.b16 %v98
    %v442 = vunpack.c.h.b16 %v98
    %v443 = vunpack.c.l.b16 %v99
    %v444 = vunpack.c.h.b16 %v99
    %v445 = vunpack.c.l.b16 %v100
    %v446 = vunpack.c.h.b16 %v100
    %v447 = vunpack.c.l.b16 %v101
    %v448 = vunpack.c.h.b16 %v101
    %v449 = vunpack.c.l.b16 %v102
    %v450 = vunpack.c.h.b16 %v102
    %v451 = vunpack.c.l.b16 %v103
    %v452 = vunpack.c.h.b16 %v103
    %v453 = vunpack.c.l.b16 %v104
    %v454 = vunpack.c.h.b16 %v104
    %v455 = vunpack.c.l.b16 %v105
    %v456 = vunpack.c.h.b16 %v105
    %v457 = vunpack.c.l.b16 %v106
    %v458 = vunpack.c.h.b16 %v106
    %v459 = vunpack.c.l.b16 %v107
    %v460 = vunpack.c.h.b16 %v107
    %v461 = vunpack.c.l.b16 %v108
    %v462 = vunpack.c.h.b16 %v108
    %v463 = vunpack.c.l.b16 %v109
    %v464 = vunpack.c.h.b16 %v109
    %v465 = vunpack.c.l.b16 %v110
    %v466 = vunpack.c.h.b16 %v110
    %v467 = vunpack.c.l.b16 %v111
    %v468 = vunpack.c.h.b16 %v111
    %v469 = vunpack.c.l.b16 %v112
    %v470 = vunpack.c.h.b16 %v112
    %v471 = vunpack.c.l.b16 %v113
    %v472 = vunpack.c.h.b16 %v113
    %v473 = vunpack.c.l.b16 %v114
    %v474 = vunpack.c.h.b16 %v114
    %v475 = vunpack.c.l.b16 %v115
    %v476 = vunpack.c.h.b16 %v115
    %v477 = vunpack.c.l.b16 %v116
    %v478 = vunpack.c.h.b16 %v116
    %v479 = vunpack.c.l.b16 %v117
    %v480 = vunpack.c.h.b16 %v117
    %v481 = vunpack.c.l.b16 %v118
    %v482 = vunpack.c.h.b16 %v118
    %v483 = vunpack.c.l.b16 %v119
    %v484 = vunpack.c.h.b16 %v119
    %v485 = vunpack.c.l.b16 %v120
    %v486 = vunpack.c.h.b16 %v120
    %v487 = vunpack.c.l.b16 %v121
    %v488 = vunpack.c.h.b16 %v121
    %v489 = vunpack.c.l.b16 %v122
    %v490 = vunpack.c.h.b16 %v122
    %v491 = vunpack.c.l.b16 %v123
    %v492 = vunpack.c.h.b16 %v123
    %v493 = vunpack.c.l.b16 %v124
    %v494 = vunpack.c.h.b16 %v124
    %v495 = vunpack.c.l.b16 %v125
    %v496 = vunpack.c.h.b16 %v125
    %v497 = vunpack.c.l.b16 %v126
    %v498 = vunpack.c.h.b16 %v126
    %v499 = vunpack.c.l.b16 %v127
    %v500 = vunpack.c.h.b16 %v127
    %v501 = vunpack.c.l.b16 %v128
    %v502 = vunpack.c.h.b16 %v128
    %v503 = vunpack.c.l.b16 %v129
    %v504 = vunpack.c.h.b16 %v129
    %v505 = vunpack.c.l.b16 %v130
    %v506 = vunpack.c.h.b16 %v130
    %v507 = vunpack.c.l.b16 %v131
    %v508 = vunpack.c.h.b16 %v131
    %v509 = vunpack.c.l.b16 %v132
    %v510 = vunpack.c.h.b16 %v132
    %v511 = vunpack.c.l.b16 %v133
    %v512 = vunpack.c.h.b16 %v133
    %v513 = vunpack.c.l.b16 %v134
    %v514 = vunpack.c.h.b16 %v134
    %v515 = vunpack.c.l.b16 %v135
    %v516 = vunpack.c.h.b16 %v135
    %v517 = vunpack.c.l.b16 %v136
    %v518 = vunpack.c.h.b16 %v136
    %v519 = vunpack.c.l.b16 %v137
    %v520 = vunpack.c.h.b16 %v137
    %v521 = vunpack.c.l.b16 %v138
    %v522 = vunpack.c.h.b16 %v138
    %v523 = vunpack.c.l.b16 %v139
    %v524 = vunpack.c.h.b16 %v139
    %v525 = vunpack.c.l.b16 %v140
    %v526 = vunpack.c.h.b16 %v140
    %v527 = vunpack.c.l.b16 %v141
    %v528 = vunpack.c.h.b16 %v141
    %v529 = vunpack.c.l.b16 %v142
    %v530 = vunpack.c.h.b16 %v142
    %v531 = vunpack.c.l.b16 %v143
    %v532 = vunpack.c.h.b16 %v143
    %v533 = vunpack.c.l.b16 %v144
    %v534 = vunpack.c.h.b16 %v144
    %v535 = vunpack.c.l.b16 %v145
    %v536 = vunpack.c.h.b16 %v145
    %v537 = vunpack.c.l.b16 %v146
    %v538 = vunpack.c.h.b16 %v146
    %v539 = vunpack.c.l.b16 %v147
    %v540 = vunpack.c.h.b16 %v147
    %v541 = vunpack.c.l.b16 %v148
    %v542 = vunpack.c.h.b16 %v148
    %v543 = vunpack.c.l.b16 %v149
    %v544 = vunpack.c.h.b16 %v149
    %v545 = vunpack.c.l.b16 %v150
    %v546 = vunpack.c.h.b16 %v150
    %v547 = vunpack.c.l.b16 %v151
    %v548 = vunpack.c.h.b16 %v151
    %v549 = vunpack.c.l.b16 %v152
    %v550 = vunpack.c.h.b16 %v152
    %v551 = vunpack.c.l.b16 %v153
    %v552 = vunpack.c.h.b16 %v153
    %v553 = vunpack.c.l.b16 %v154
    %v554 = vunpack.c.h.b16 %v154
    %v555 = vunpack.c.l.b16 %v155
    %v556 = vunpack.c.h.b16 %v155
    %v557 = vunpack.c.l.b16 %v156
    %v558 = vunpack.c.h.b16 %v156
    %v559 = vunpack.c.l.b16 %v157
    %v560 = vunpack.c.h.b16 %v157
    %v561 = vunpack.c.l.b16 %v158
    %v562 = vunpack.c.h.b16 %v158
    %v563 = vunpack.c.l.b16 %v159
    %v564 = vunpack.c.h.b16 %v159
    %v565 = vunpack.c.l.b16 %v160
    %v566 = vunpack.c.h.b16 %v160
    %v567 = vunpack.c.l.b16 %v161
    %v568 = vunpack.c.h.b16 %v161
    %v569 = vunpack.c.l.b16 %v162
    %v570 = vunpack.c.h.b16 %v162
    %v571 = vunpack.c.l.b16 %v163
    %v572 = vunpack.c.h.b16 %v163
    %v573 = vunpack.c.l.b16 %v164
    %v574 = vunpack.c.h.b16 %v164
    %v575 = vunpack.c.l.b16 %v165
    %v576 = vunpack.c.h.b16 %v165
    %v577 = vunpack.c.l.b16 %v166
    %v578 = vunpack.c.h.b16 %v166
    %v579 = vunpack.c.l.b16 %v167
    %v580 = vunpack.c.h.b16 %v167
    %v581 = vunpack.c.l.b16 %v168
    %v582 = vunpack.c.h.b16 %v168
    %v583 = vunpack.c.l.b16 %v169
    %v584 = vunpack.c.h.b16 %v169
    %v585 = vunpack.c.l.b16 %v170
    %v586 = vunpack.c.h.b16 %v170
    %v587 = vunpack.c.l.b16 %v171
    %v588 = vunpack.c.h.b16 %v171
    %v589 = vunpack.c.l.b16 %v172
    %v590 = vunpack.c.h.b16 %v172
    %v591 = vunpack.c.l.b16 %v173
    %v592 = vunpack.c.h.b16 %v173
    %v593 = vunpack.c.l.b16 %v174
    %v594 = vunpack.c.h.b16 %v174
    %v595 = vunpack.c.l.b16 %v175
    %v596 = vunpack.c.h.b16 %v175
    %v597 = vunpack.c.l.b16 %v176
    %v598 = vunpack.c.h.b16 %v176
    %v599 = vunpack.c.l.b16 %v177
    %v600 = vunpack.c.h.b16 %v177
    %v601 = vunpack.c.l.b16 %v178
    %v602 = vunpack.c.h.b16 %v178
    %v603 = vunpack.c.l.b16 %v179
    %v604 = vunpack.c.h.b16 %v179
    %v605 = vunpack.c.l.b16 %v180
    %v606 = vunpack.c.h.b16 %v180
    %v607 = vunpack.c.l.b16 %v181
    %v608 = vunpack.c.h.b16 %v181
    %v609 = vunpack.c.l.b16 %v182
    %v610 = vunpack.c.h.b16 %v182
    %v611 = vunpack.c.l.b16 %v183
    %v612 = vunpack.c.h.b16 %v183
    %v613 = vunpack.c.l.b16 %v184
    %v614 = vunpack.c.h.b16 %v184
    %v615 = vunpack.c.l.b16 %v185
    %v616 = vunpack.c.h.b16 %v185
    %v617 = vunpack.c.l.b16 %v186
    %v618 = vunpack.c.h.b16 %v186
    %v619 = vunpack.c.l.b16 %v187
    %v620 = vunpack.c.h.b16 %v187
    %v621 = vunpack.c.l.b16 %v188
    %v622 = vunpack.c.h.b16 %v188
    %v623 = vunpack.c.l.b16 %v189
    %v624 = vunpack.c.h.b16 %v189
    %v625 = vunpack.c.l.b16 %v190
    %v626 = vunpack.c.h.b16 %v190
    %v627 = vunpack.c.l.b16 %v191
    %v628 = vunpack.c.h.b16 %v191
    %v629 = vunpack.c.l.b16 %v192
    %v630 = vunpack.c.h.b16 %v192
    %v631 = vunpack.c.l.b16 %v193
    %v632 = vunpack.c.h.b16 %v193
    %v633 = vunpack.c.l.b16 %v194
    %v634 = vunpack.c.h.b16 %v194
    %v635 = vunpack.c.l.b16 %v195
    %v636 = vunpack.c.h.b16 %v195
    %v637 = vunpack.c.l.b16 %v196
    %v638 = vunpack.c.h.b16 %v196
    %v639 = vunpack.c.l.b16 %v197
    %v640 = vunpack.c.h.b16 %v197
    %v641 = vunpack.c.l.b16 %v198
    %v642 = vunpack.c.h.b16 %v198
    %v643 = vunpack.c.l.b16 %v199
    %v644 = vunpack.c.h.b16 %v199
    %v645 = vunpack.c.l.b16 %v200
    %v646 = vunpack.c.h.b16 %v200
    %v647 = vunpack.c.l.b16 %v201
    %v648 = vunpack.c.h.b16 %v201
    %v649 = vunpack.c.l.b16 %v202
    %v650 = vunpack.c.h.b16 %v202
    %v651 = vunpack.c.l.b16 %v203
    %v652 = vunpack.c.h.b16 %v203
    %v653 = vunpack.c.l.b16 %v204
    %v654 = vunpack.c.h.b16 %v204
    %v655 = vunpack.c.l.b16 %v205
    %v656 = vunpack.c.h.b16 %v205
    %v657 = vunpack.c.l.b16 %v206
    %v658 = vunpack.c.h.b16 %v206
    %v659 = vunpack.c.l.b16 %v207
    %v660 = vunpack.c.h.b16 %v207
    %v661 = vunpack.c.l.b16 %v208
    %v662 = vunpack.c.h.b16 %v208
    %v663 = vunpack.c.l.b16 %v209
    %v664 = vunpack.c.h.b16 %v209
    %v665 = vunpack.c.l.b16 %v210
    %v666 = vunpack.c.h.b16 %v210
    %v667 = vunpack.c.l.b16 %v211
    %v668 = vunpack.c.h.b16 %v211
    %v669 = vunpack.c.l.b16 %v212
    %v670 = vunpack.c.h.b16 %v212
    %v671 = vunpack.c.l.b16 %v213
    %v672 = vunpack.c.h.b16 %v213
    %v673 = vunpack.c.l.b16 %v214
    %v674 = vunpack.c.h.b16 %v214
    %v675 = vunpack.c.l.b16 %v215
    %v676 = vunpack.c.h.b16 %v215
    %v677 = vunpack.c.l.b16 %v216
    %v678 = vunpack.c.h.b16 %v216
    %v679 = vunpack.c.l.b16 %v217
    %v680 = vunpack.c.h.b16 %v217
    %v681 = vunpack.c.l.b16 %v218
    %v682 = vunpack.c.h.b16 %v218
    %v683 = vunpack.c.l.b16 %v219
    %v684 = vunpack.c.h.b16 %v219
    %v685 = vunpack.c.l.b16 %v220
    %v686 = vunpack.c.h.b16 %v220
    %v687 = vunpack.c.l.b16 %v221
    %v688 = vunpack.c.h.b16 %v221
    %v689 = vunpack.c.l.b16 %v222
    %v690 = vunpack.c.h.b16 %v222
    %v691 = vunpack.c.l.b16 %v223
    %v692 = vunpack.c.h.b16 %v223
    %v693 = vunpack.c.l.b16 %v224
    %v694 = vunpack.c.h.b16 %v224
    %v695 = vunpack.c.l.b16 %v225
    %v696 = vunpack.c.h.b16 %v225
    %v697 = vunpack.c.l.b16 %v226
    %v698 = vunpack.c.h.b16 %v226
    %v699 = vunpack.c.l.b16 %v227
    %v700 = vunpack.c.h.b16 %v227
    %v701 = vunpack.c.l.b16 %v228
    %v702 = vunpack.c.h.b16 %v228
    %v703 = vunpack.c.l.b16 %v229
    %v704 = vunpack.c.h.b16 %v229
    %v705 = vpack.c.b16 %v423, %v417
    %v706 = vpack.c.b16 %v424, %v418
    %v707 = vpack.c.b16 %v425, %v419
    %v708 = vpack.c.b16 %v426, %v420
    %v709 = vpack.c.b16 %v427, %v421
    %v710 = vpack.c.b16 %v428, %v422
    %v711 = vpack.c.b16 %v435, %v429
    %v712 = vpack.c.b16 %v436, %v430
    %v713 = vpack.c.b16 %v437, %v431
    %v714 = vpack.c.b16 %v438, %v432
    %v715 = vpack.c.b16 %v439, %v433
    %v716 = vpack.c.b16 %v440, %v434
    %v717 = vpack.c.b16 %v447, %v441
    %v718 = vpack.c.b16 %v448, %v442
    %v719 = vpack.c.b16 %v449, %v443
    %v720 = vpack.c.b16 %v450, %v444
    %v721 = vpack.c.b16 %v451, %v445
    %v722 = vpack.c.b16 %v452, %v446
    %v723 = vpack.c.b16 %v459, %v453
    %v724 = vpack.c.b16 %v460, %v454
    %v725 = vpack.c.b16 %v461, %v455
    %v726 = vpack.c.b16 %v462, %v456
    %v727 = vpack.c.b16 %v463, %v457
    %v728 = vpack.c.b16 %v464, %v458
    %v729 = vpack.c.b16 %v471, %v465
    %v730 = vpack.c.b16 %v472, %v466
    %v731 = vpack.c.b16 %v473, %v467
    %v732 = vpack.c.b16 %v474, %v468
    %v733 = vpack.c.b16 %v475, %v469
    %v734 = vpack.c.b16 %v476, %v470
    %v735 = vpack.c.b16 %v483, %v477
    %v736 = vpack.c.b16 %v484, %v478
    %v737 = vpack.c.b16 %v485, %v479
    %v738 = vpack.c.b16 %v486, %v480
    %v739 = vpack.c.b16 %v487, %v481
    %v740 = vpack.c.b16 %v488, %v482
    %v741 = vpack.c.b16 %v495, %v489
    %v742 = vpack.c.b16 %v496, %v490
    %v743 = vpack.c.b16 %v497, %v491
    %v744 = vpack.c.b16 %v498, %v492
    %v745 = vpack.c.b16 %v499, %v493
    %v746 = vpack.c.b16 %v500, %v494
    %v747 = vpack.c.b16 %v507, %v501
    %v748 = vpack.c.b16 %v508, %v502
    %v749 = vpack.c.b16 %v509, %v503
    %v750 = vpack.c.b16 %v510, %v504
    %v751 = vpack.c.b16 %v511, %v505
    %v752 = vpack.c.b16 %v512, %v506
    %v753 = vpack.c.b16 %v519, %v513
    %v754 = vpack.c.b16 %v520, %v514
    %v755 = vpack.c.b16 %v521, %v515
    %v756 = vpack.c.b16 %v522, %v516
    %v757 = vpack.c.b16 %v523, %v517
    %v758 = vpack.c.b16 %v524, %v518
    %v759 = vpack.c.b16 %v531, %v525
    %v760 = vpack.c.b16 %v532, %v526
    %v761 = vpack.c.b16 %v533, %v527
    %v762 = vpack.c.b16 %v534, %v528
    %v763 = vpack.c.b16 %v535, %v529
    %v764 = vpack.c.b16 %v536, %v530
    %v765 = vpack.c.b16 %v543, %v537
    %v766 = vpack.c.b16 %v544, %v538
    %v767 = vpack.c.b16 %v545, %v539
    %v768 = vpack.c.b16 %v546, %v540
    %v769 = vpack.c.b16 %v547, %v541
    %v770 = vpack.c.b16 %v548, %v542
    %v771 = vpack.c.b16 %v555, %v549
    %v772 = vpack.c.b16 %v556, %v550
    %v773 = vpack.c.b16 %v557, %v551
    %v774 = vpack.c.b16 %v558, %v552
    %v775 = vpack.c.b16 %v559, %v553
    %v776 = vpack.c.b16 %v560, %v554
    %v777 = vpack.c.b16 %v567, %v561
    %v778 = vpack.c.b16 %v568, %v562
    %v779 = vpack.c.b16 %v569, %v563
    %v780 = vpack.c.b16 %v570, %v564
    %v781 = vpack.c.b16 %v571, %v565
    %v782 = vpack.c.b16 %v572, %v566
    %v783 = vpack.c.b16 %v579, %v573
    %v784 = vpack.c.b16 %v580, %v574
    %v785 = vpack.c.b16 %v581, %v575
    %v786 = vpack.c.b16 %v582, %v576
    %v787 = vpack.c.b16 %v583, %v577
    %v788 = vpack.c.b16 %v584, %v578
    %v789 = vpack.c.b16 %v591, %v585
    %v790 = vpack.c.b16 %v592, %v586
    %v791 = vpack.c.b16 %v593, %v587
    %v792 = vpack.c.b16 %v594, %v588
    %v793 = vpack.c.b16 %v595, %v589
    %v794 = vpack.c.b16 %v596, %v590
    %v795 = vpack.c.b16 %v603, %v597
    %v796 = vpack.c.b16 %v604, %v598
    %v797 = vpack.c.b16 %v605, %v599
    %v798 = vpack.c.b16 %v606, %v600
    %v799 = vpack.c.b16 %v607, %v601
    %v800 = vpack.c.b16 %v608, %v602
    %v801 = vpack.c.b16 %v615, %v609
    %v802 = vpack.c.b16 %v616, %v610
    %v803 = vpack.c.b16 %v617, %v611
    %v804 = vpack.c.b16 %v618, %v612
    %v805 = vpack.c.b16 %v619, %v613
    %v806 = vpack.c.b16 %v620, %v614
    %v807 = vpack.c.b16 %v627, %v621
    %v808 = vpack.c.b16 %v628, %v622
    %v809 = vpack.c.b16 %v629, %v623
    %v810 = vpack.c.b16 %v630, %v624
    %v811 = vpack.c.b16 %v631, %v625
    %v812 = vpack.c.b16 %v632, %v626
    %v813 = vpack.c.b16 %v639, %v633
    %v814 = vpack.c.b16 %v640, %v634
    %v815 = vpack.c.b16 %v641, %v635
    %v816 = vpack.c.b16 %v642, %v636
    %v817 = vpack.c.b16 %v643, %v637
    %v818 = vpack.c.b16 %v644, %v638
    %v819 = vpack.c.b16 %v651, %v645
    %v820 = vpack.c.b16 %v652, %v646
    %v821 = vpack.c.b16 %v653, %v647
    %v822 = vpack.c.b16 %v654, %v648
    %v823 = vpack.c.b16 %v655, %v649
    %v824 = vpack.c.b16 %v656, %v650
    %v825 = vpack.c.b16 %v663, %v657
    %v826 = vpack.c.b16 %v664, %v658
    %v827 = vpack.c.b16 %v665, %v659
    %v828 = vpack.c.b16 %v666, %v660
    %v829 = vpack.c.b16 %v667, %v661
    %v830 = vpack.c.b16 %v668, %v662
    %v831 = vpack.c.b16 %v675, %v669
    %v832 = vpack.c.b16 %v676, %v670
    %v833 = vpack.c.b16 %v677, %v671
    %v834 = vpack.c.b16 %v678, %v672
    %v835 = vpack.c.b16 %v679, %v673
    %v836 = vpack.c.b16 %v680, %v674
    %v837 = vpack.c.b16 %v687, %v681
    %v838 = vpack.c.b16 %v688, %v682
    %v839 = vpack.c.b16 %v689, %v683
    %v840 = vpack.c.b16 %v690, %v684
    %v841 = vpack.c.b16 %v691, %v685
    %v842 = vpack.c.b16 %v692, %v686
    %v843 = vpack.c.b16 %v699, %v693
    %v844 = vpack.c.b16 %v700, %v694
    %v845 = vpack.c.b16 %v701, %v695
    %v846 = vpack.c.b16 %v702, %v696
    %v847 = vpack.c.b16 %v703, %v697
    %v848 = vpack.c.b16 %v704, %v698
    %993 = vmatprep.subr.bf16.mxu0 %v706
    %994 = vmatpush1.bf16.msra.mxu0 %v705
    %995 = vmatprep.subr.bf16.mxu0 %v712
    %996 = vmatpush1.bf16.msra.mxu0 %v711
    %997 = vmatprep.subr.bf16.mxu0 %v718
    %998 = vmatpush1.bf16.msra.mxu0 %v717
    %999 = vmatprep.subr.bf16.mxu0 %v724
    %1000 = vmatpush1.bf16.msra.mxu0 %v723
    %1001 = vmatprep.subr.bf16.mxu0 %v730
    %1002 = vmatpush1.bf16.msra.mxu0 %v729
    %1003 = vmatprep.subr.bf16.mxu0 %v736
    %1004 = vmatpush1.bf16.msra.mxu0 %v735
    %1005 = vmatprep.subr.bf16.mxu0 %v742
    %1006 = vmatpush1.bf16.msra.mxu0 %v741
    %1007 = vmatprep.subr.bf16.mxu0 %v748
    %1008 = vmatpush1.bf16.msra.mxu0 %v747
    %1009 = vmatprep.subr.bf16.mxu0 %v754
    %1010 = vmatpush1.bf16.msra.mxu0 %v753
    %1011 = vmatprep.subr.bf16.mxu0 %v760
    %1012 = vmatpush1.bf16.msra.mxu0 %v759
    %1013 = vmatprep.subr.bf16.mxu0 %v766
    %1014 = vmatpush1.bf16.msra.mxu0 %v765
    %1015 = vmatprep.subr.bf16.mxu0 %v772
    %1016 = vmatpush1.bf16.msra.mxu0 %v771
    %1017 = vmatprep.subr.bf16.mxu0 %v778
    %1018 = vmatpush1.bf16.msra.mxu0 %v777
    %1019 = vmatprep.subr.bf16.mxu0 %v784
    %1020 = vmatpush1.bf16.msra.mxu0 %v783
    %1021 = vmatprep.subr.bf16.mxu0 %v790
    %1022 = vmatpush1.bf16.msra.mxu0 %v789
    %1023 = vmatprep.subr.bf16.mxu0 %v796
    %1024 = vmatpush1.bf16.msra.mxu0 %v795
    %1025 = vmatprep.mubr.bf16.mxu0 %v268
    %1026 = vmatmul.mubr.bf16.gmra.mrb[0].mxu0 %v267
    %v1027 = vpop.f32.mrb[0].mxu0
    %v1028 = vadd.f32 %v235, %v1027
    %v1029 = vpop.f32.mrb[0].mxu0
    %v1030 = vadd.f32 %v239, %v1029
    %v1031 = vpop.f32.mrb[0].mxu0
    %v1032 = vpop.f32.mrb[0].mxu0
    %1033 = vdwg.mxu0
    %1034 = vmatprep.subr.bf16.mxu0 %v802
    %1035 = vmatpush1.bf16.msra.mxu0 %v801
    %1036 = vmatprep.subr.bf16.mxu0 %v808
    %1037 = vmatpush1.bf16.msra.mxu0 %v807
    %1038 = vmatprep.subr.bf16.mxu0 %v814
    %1039 = vmatpush1.bf16.msra.mxu0 %v813
    %1040 = vmatprep.subr.bf16.mxu0 %v820
    %1041 = vmatpush1.bf16.msra.mxu0 %v819
    %1042 = vmatprep.subr.bf16.mxu0 %v826
    %1043 = vmatpush1.bf16.msra.mxu0 %v825
    %1044 = vmatprep.subr.bf16.mxu0 %v832
    %1045 = vmatpush1.bf16.msra.mxu0 %v831
    %1046 = vmatprep.subr.bf16.mxu0 %v838
    %1047 = vmatpush1.bf16.msra.mxu0 %v837
    %1048 = vmatprep.subr.bf16.mxu0 %v844
    %1049 = vmatpush1.bf16.msra.mxu0 %v843
    %1050 = vmatprep.subr.bf16.mxu0 0
    %1051 = vmatpush1.bf16.msra.mxu0 0
    %1052 = vmatprep.subr.bf16.mxu0 0
    %1053 = vmatpush1.bf16.msra.mxu0 0
    %1054 = vmatprep.subr.bf16.mxu0 0
    %1055 = vmatpush1.bf16.msra.mxu0 0
    %1056 = vmatprep.subr.bf16.mxu0 0
    %1057 = vmatpush1.bf16.msra.mxu0 0
    %1058 = vmatprep.subr.bf16.mxu0 0
    %1059 = vmatpush1.bf16.msra.mxu0 0
    %1060 = vmatprep.subr.bf16.mxu0 0
    %1061 = vmatpush1.bf16.msra.mxu0 0
    %1062 = vmatprep.subr.bf16.mxu0 0
    %1063 = vmatpush1.bf16.msra.mxu0 0
    %1064 = vmatprep.subr.bf16.mxu0 0
    %1065 = vmatpush1.bf16.msra.mxu0 0
    %1066 = vmatprep.mubr.bf16.mxu0 0
    %1067 = vmatmul.mubr.bf16.gmra.mrb[0].mxu0 %v269
    %v1068 = vpop.f32.mrb[0].mxu0
    %v1069 = vadd.f32 %v1028, %v1068
    %v1070 = vpop.f32.mrb[0].mxu0
    %v1071 = vadd.f32 %v1030, %v1070
    %v1072 = vpop.f32.mrb[0].mxu0
    %v1073 = vpop.f32.mrb[0].mxu0
    %1074 = vdwg.mxu0
    %1075 = vmatprep.subr.bf16.mxu0 %v708
    %1076 = vmatpush1.bf16.msra.mxu0 %v707
    %1077 = vmatprep.subr.bf16.mxu0 %v714
    %1078 = vmatpush1.bf16.msra.mxu0 %v713
    %1079 = vmatprep.subr.bf16.mxu0 %v720
    %1080 = vmatpush1.bf16.msra.mxu0 %v719
    %1081 = vmatprep.subr.bf16.mxu0 %v726
    %1082 = vmatpush1.bf16.msra.mxu0 %v725
    %1083 = vmatprep.subr.bf16.mxu0 %v732
    %1084 = vmatpush1.bf16.msra.mxu0 %v731
    %1085 = vmatprep.subr.bf16.mxu0 %v738
    %1086 = vmatpush1.bf16.msra.mxu0 %v737
    %1087 = vmatprep.subr.bf16.mxu0 %v744
    %1088 = vmatpush1.bf16.msra.mxu0 %v743
    %1089 = vmatprep.subr.bf16.mxu0 %v750
    %1090 = vmatpush1.bf16.msra.mxu0 %v749
    %1091 = vmatprep.subr.bf16.mxu0 %v756
    %1092 = vmatpush1.bf16.msra.mxu0 %v755
    %1093 = vmatprep.subr.bf16.mxu0 %v762
    %1094 = vmatpush1.bf16.msra.mxu0 %v761
    %1095 = vmatprep.subr.bf16.mxu0 %v768
    %1096 = vmatpush1.bf16.msra.mxu0 %v767
    %1097 = vmatprep.subr.bf16.mxu0 %v774
    %1098 = vmatpush1.bf16.msra.mxu0 %v773
    %1099 = vmatprep.subr.bf16.mxu0 %v780
    %1100 = vmatpush1.bf16.msra.mxu0 %v779
    %1101 = vmatprep.subr.bf16.mxu0 %v786
    %1102 = vmatpush1.bf16.msra.mxu0 %v785
    %1103 = vmatprep.subr.bf16.mxu0 %v792
    %1104 = vmatpush1.bf16.msra.mxu0 %v791
    %1105 = vmatprep.subr.bf16.mxu0 %v798
    %1106 = vmatpush1.bf16.msra.mxu0 %v797
    %1107 = vmatprep.mubr.bf16.mxu0 %v268
    %1108 = vmatmul.mubr.bf16.gmra.mrb[0].mxu0 %v267
    %v1109 = vpop.f32.mrb[0].mxu0
    %v1110 = vadd.f32 %v243, %v1109
    %v1111 = vpop.f32.mrb[0].mxu0
    %v1112 = vadd.f32 %v247, %v1111
    %v1113 = vpop.f32.mrb[0].mxu0
    %v1114 = vpop.f32.mrb[0].mxu0
    %1115 = vdwg.mxu0
    %1116 = vmatprep.subr.bf16.mxu0 %v804
    %1117 = vmatpush1.bf16.msra.mxu0 %v803
    %1118 = vmatprep.subr.bf16.mxu0 %v810
    %1119 = vmatpush1.bf16.msra.mxu0 %v809
    %1120 = vmatprep.subr.bf16.mxu0 %v816
    %1121 = vmatpush1.bf16.msra.mxu0 %v815
    %1122 = vmatprep.subr.bf16.mxu0 %v822
    %1123 = vmatpush1.bf16.msra.mxu0 %v821
    %1124 = vmatprep.subr.bf16.mxu0 %v828
    %1125 = vmatpush1.bf16.msra.mxu0 %v827
    %1126 = vmatprep.subr.bf16.mxu0 %v834
    %1127 = vmatpush1.bf16.msra.mxu0 %v833
    %1128 = vmatprep.subr.bf16.mxu0 %v840
    %1129 = vmatpush1.bf16.msra.mxu0 %v839
    %1130 = vmatprep.subr.bf16.mxu0 %v846
    %1131 = vmatpush1.bf16.msra.mxu0 %v845
    %1132 = vmatprep.subr.bf16.mxu0 0
    %1133 = vmatpush1.bf16.msra.mxu0 0
    %1134 = vmatprep.subr.bf16.mxu0 0
    %1135 = vmatpush1.bf16.msra.mxu0 0
    %1136 = vmatprep.subr.bf16.mxu0 0
    %1137 = vmatpush1.bf16.msra.mxu0 0
    %1138 = vmatprep.subr.bf16.mxu0 0
    %1139 = vmatpush1.bf16.msra.mxu0 0
    %1140 = vmatprep.subr.bf16.mxu0 0
    %1141 = vmatpush1.bf16.msra.mxu0 0
    %1142 = vmatprep.subr.bf16.mxu0 0
    %1143 = vmatpush1.bf16.msra.mxu0 0
    %1144 = vmatprep.subr.bf16.mxu0 0
    %1145 = vmatpush1.bf16.msra.mxu0 0
    %1146 = vmatprep.subr.bf16.mxu0 0
    %1147 = vmatpush1.bf16.msra.mxu0 0
    %1148 = vmatprep.mubr.bf16.mxu0 0
    %1149 = vmatmul.mubr.bf16.gmra.mrb[0].mxu0 %v269
    %v1150 = vpop.f32.mrb[0].mxu0
    %v1151 = vadd.f32 %v1110, %v1150
    %v1152 = vpop.f32.mrb[0].mxu0
    %v1153 = vadd.f32 %v1112, %v1152
    %v1154 = vpop.f32.mrb[0].mxu0
    %v1155 = vpop.f32.mrb[0].mxu0
    %1156 = vdwg.mxu0
    %1157 = vmatprep.subr.bf16.mxu0 %v710
    %1158 = vmatpush1.bf16.msra.mxu0 %v709
    %1159 = vmatprep.subr.bf16.mxu0 %v716
    %1160 = vmatpush1.bf16.msra.mxu0 %v715
    %1161 = vmatprep.subr.bf16.mxu0 %v722
    %1162 = vmatpush1.bf16.msra.mxu0 %v721
    %1163 = vmatprep.subr.bf16.mxu0 %v728
    %1164 = vmatpush1.bf16.msra.mxu0 %v727
    %1165 = vmatprep.subr.bf16.mxu0 %v734
    %1166 = vmatpush1.bf16.msra.mxu0 %v733
    %1167 = vmatprep.subr.bf16.mxu0 %v740
    %1168 = vmatpush1.bf16.msra.mxu0 %v739
    %1169 = vmatprep.subr.bf16.mxu0 %v746
    %1170 = vmatpush1.bf16.msra.mxu0 %v745
    %1171 = vmatprep.subr.bf16.mxu0 %v752
    %1172 = vmatpush1.bf16.msra.mxu0 %v751
    %1173 = vmatprep.subr.bf16.mxu0 %v758
    %1174 = vmatpush1.bf16.msra.mxu0 %v757
    %1175 = vmatprep.subr.bf16.mxu0 %v764
    %1176 = vmatpush1.bf16.msra.mxu0 %v763
    %1177 = vmatprep.subr.bf16.mxu0 %v770
    %1178 = vmatpush1.bf16.msra.mxu0 %v769
    %1179 = vmatprep.subr.bf16.mxu0 %v776
    %1180 = vmatpush1.bf16.msra.mxu0 %v775
    %1181 = vmatprep.subr.bf16.mxu0 %v782
    %1182 = vmatpush1.bf16.msra.mxu0 %v781
    %1183 = vmatprep.subr.bf16.mxu0 %v788
    %1184 = vmatpush1.bf16.msra.mxu0 %v787
    %1185 = vmatprep.subr.bf16.mxu0 %v794
    %1186 = vmatpush1.bf16.msra.mxu0 %v793
    %1187 = vmatprep.subr.bf16.mxu0 %v800
    %1188 = vmatpush1.bf16.msra.mxu0 %v799
    %1189 = vmatprep.mubr.bf16.mxu0 %v268
    %1190 = vmatmul.mubr.bf16.gmra.mrb[0].mxu0 %v267
    %v1191 = vpop.f32.mrb[0].mxu0
    %v1192 = vadd.f32 %v251, %v1191
    %v1193 = vpop.f32.mrb[0].mxu0
    %v1194 = vadd.f32 %v255, %v1193
    %v1195 = vpop.f32.mrb[0].mxu0
    %v1196 = vpop.f32.mrb[0].mxu0
    %1197 = vdwg.mxu0
    %1198 = vmatprep.subr.bf16.mxu0 %v806
    %1199 = vmatpush1.bf16.msra.mxu0 %v805
    %1200 = vmatprep.subr.bf16.mxu0 %v812
    %1201 = vmatpush1.bf16.msra.mxu0 %v811
    %1202 = vmatprep.subr.bf16.mxu0 %v818
    %1203 = vmatpush1.bf16.msra.mxu0 %v817
    %1204 = vmatprep.subr.bf16.mxu0 %v824
    %1205 = vmatpush1.bf16.msra.mxu0 %v823
    %1206 = vmatprep.subr.bf16.mxu0 %v830
    %1207 = vmatpush1.bf16.msra.mxu0 %v829
    %1208 = vmatprep.subr.bf16.mxu0 %v836
    %1209 = vmatpush1.bf16.msra.mxu0 %v835
    %1210 = vmatprep.subr.bf16.mxu0 %v842
    %1211 = vmatpush1.bf16.msra.mxu0 %v841
    %1212 = vmatprep.subr.bf16.mxu0 %v848
    %1213 = vmatpush1.bf16.msra.mxu0 %v847
    %1214 = vmatprep.subr.bf16.mxu0 0
    %1215 = vmatpush1.bf16.msra.mxu0 0
    %1216 = vmatprep.subr.bf16.mxu0 0
    %1217 = vmatpush1.bf16.msra.mxu0 0
    %1218 = vmatprep.subr.bf16.mxu0 0
    %1219 = vmatpush1.bf16.msra.mxu0 0
    %1220 = vmatprep.subr.bf16.mxu0 0
    %1221 = vmatpush1.bf16.msra.mxu0 0
    %1222 = vmatprep.subr.bf16.mxu0 0
    %1223 = vmatpush1.bf16.msra.mxu0 0
    %1224 = vmatprep.subr.bf16.mxu0 0
    %1225 = vmatpush1.bf16.msra.mxu0 0
    %1226 = vmatprep.subr.bf16.mxu0 0
    %1227 = vmatpush1.bf16.msra.mxu0 0
    %1228 = vmatprep.subr.bf16.mxu0 0
    %1229 = vmatpush1.bf16.msra.mxu0 0
    %1230 = vmatprep.mubr.bf16.mxu0 0
    %1231 = vmatmul.mubr.bf16.gmra.mrb[0].mxu0 %v269
    %v1232 = vpop.f32.mrb[0].mxu0
    %v1233 = vadd.f32 %v1192, %v1232
    %v1234 = vpop.f32.mrb[0].mxu0
    %v1235 = vadd.f32 %v1194, %v1234
    %v1236 = vpop.f32.mrb[0].mxu0
    %v1237 = vpop.f32.mrb[0].mxu0
    %1238 = vdwg.mxu0
    %v1239 = vmax.f32 %v1069, 0.0
    %v1240 = vmax.f32 %v1071, 0.0
    %v1241 = vmax.f32 %v1151, 0.0
    %v1242 = vmax.f32 %v1153, 0.0
    %v1243 = vmax.f32 %v1233, 0.0
    %v1244 = vmax.f32 %v1235, 0.0
    %v1245 = vpack.c.bf16 %v1239, %v1239
    %v1246 = vpack.c.bf16 %v1240, %v1240
    %v1247 = vpack.c.bf16 %v1241, %v1241
    %v1248 = vpack.c.bf16 %v1242, %v1242
    %v1249 = vpack.c.bf16 %v1243, %v1243
    %v1250 = vpack.c.bf16 %v1244, %v1244
    %v1251 = vld [vmem:[#allocation8] sm:$0xff]
    %v1252 = vld [vmem:[#allocation8 + $0x8] sm:$0xff]
    %v1253 = vld [vmem:[#allocation8 + $0x10] sm:$0xff]
    %v1254 = vld [vmem:[#allocation8 + $0x18] sm:$0xff]
    %v1255 = vld [vmem:[#allocation8 + $0x20] sm:$0xff]
    %v1256 = vld [vmem:[#allocation8 + $0x28] sm:$0xff]
    %v1257 = vld [vmem:[#allocation8 + $0x30] sm:$0xff]
    %v1258 = vld [vmem:[#allocation8 + $0x38] sm:$0xff]
    %v1259 = vld [vmem:[#allocation8 + $0x40] sm:$0xff]
    %v1260 = vld [vmem:[#allocation8 + $0x48] sm:$0xff]
    %v1261 = vld [vmem:[#allocation8 + $0x50] sm:$0xff]
    %v1262 = vld [vmem:[#allocation8 + $0x58] sm:$0xff]
    %v1263 = vld [vmem:[#allocation8 + $0x60] sm:$0xff]
    %v1264 = vld [vmem:[#allocation8 + $0x68] sm:$0xff]
    %v1265 = vld [vmem:[#allocation8 + $0x70] sm:$0xff]
    %v1266 = vld [vmem:[#allocation8 + $0x78] sm:$0xff]
    %v1267 = vld [vmem:[#allocation8 + $0x80] sm:$0xff]
    %v1268 = vld [vmem:[#allocation8 + $0x88] sm:$0xff]
    %v1269 = vld [vmem:[#allocation8 + $0x90] sm:$0xff]
    %v1270 = vld [vmem:[#allocation8 + $0x98] sm:$0xff]
    %v1271 = vld [vmem:[#allocation8 + $0xa0] sm:$0xff]
    %v1272 = vld [vmem:[#allocation8 + $0xa8] sm:$0xff]
    %v1273 = vld [vmem:[#allocation8 + $0xb0] sm:$0xff]
    %v1274 = vld [vmem:[#allocation8 + $0xb8] sm:$0xff]
    %v1275 = vld [vmem:[#allocation8 + $0xc0] sm:$0xff]
    %v1276 = vld [vmem:[#allocation8 + $0xc8] sm:$0xff]
    %v1277 = vld [vmem:[#allocation8 + $0xd0] sm:$0xff]
    %v1278 = vld [vmem:[#allocation8 + $0xd8] sm:$0xff]
    %v1279 = vld [vmem:[#allocation8 + $0xe0] sm:$0xff]
    %v1280 = vld [vmem:[#allocation8 + $0xe8] sm:$0xff]
    %v1281 = vld [vmem:[#allocation8 + $0xf0] sm:$0xff]
    %v1282 = vld [vmem:[#allocation8 + $0xf8] sm:$0xff]
    %v1283 = vld [vmem:[#allocation8 + $0x100] sm:$0xff]
    %v1284 = vld [vmem:[#allocation8 + $0x108] sm:$0xff]
    %v1285 = vld [vmem:[#allocation8 + $0x110] sm:$0xff]
    %v1286 = vld [vmem:[#allocation8 + $0x118] sm:$0xff]
    %v1287 = vld [vmem:[#allocation8 + $0x120] sm:$0xff]
    %v1288 = vld [vmem:[#allocation8 + $0x128] sm:$0xff]
    %v1289 = vld [vmem:[#allocation8 + $0x130] sm:$0xff]
    %v1290 = vld [vmem:[#allocation8 + $0x138] sm:$0xff]
    %v1291 = vld [vmem:[#allocation8 + $0x140] sm:$0xff]
    %v1292 = vld [vmem:[#allocation8 + $0x148] sm:$0xff]
    %v1293 = vld [vmem:[#allocation8 + $0x150] sm:$0xff]
    %v1294 = vld [vmem:[#allocation8 + $0x158] sm:$0xff]
    %v1295 = vld [vmem:[#allocation8 + $0x160] sm:$0xff]
    %v1296 = vld [vmem:[#allocation8 + $0x168] sm:$0xff]
    %v1297 = vld [vmem:[#allocation8 + $0x170] sm:$0xff]
    %v1298 = vld [vmem:[#allocation8 + $0x178] sm:$0xff]
    %v1299 = vld [vmem:[#allocation8 + $0x180] sm:$0xff]
    %v1300 = vld [vmem:[#allocation8 + $0x188] sm:$0xff]
    %v1301 = vld [vmem:[#allocation8 + $0x190] sm:$0xff]
    %v1302 = vld [vmem:[#allocation8 + $0x198] sm:$0xff]
    %v1303 = vld [vmem:[#allocation8 + $0x1a0] sm:$0xff]
    %v1304 = vld [vmem:[#allocation8 + $0x1a8] sm:$0xff]
    %v1305 = vld [vmem:[#allocation8 + $0x1b0] sm:$0xff]
    %v1306 = vld [vmem:[#allocation8 + $0x1b8] sm:$0xff]
    %v1307 = vld [vmem:[#allocation8 + $0x1c0] sm:$0xff]
    %v1308 = vld [vmem:[#allocation8 + $0x1c8] sm:$0xff]
    %v1309 = vld [vmem:[#allocation8 + $0x1d0] sm:$0xff]
    %v1310 = vld [vmem:[#allocation8 + $0x1d8] sm:$0xff]
    %v1311 = vld [vmem:[#allocation8 + $0x1e0] sm:$0xff]
    %v1312 = vld [vmem:[#allocation8 + $0x1e8] sm:$0xff]
    %v1313 = vld [vmem:[#allocation8 + $0x1f0] sm:$0xff]
    %v1314 = vld [vmem:[#allocation8 + $0x1f8] sm:$0xff]
    %v1315 = vld [vmem:[#allocation8 + $0x200] sm:$0xff]
    %v1316 = vld [vmem:[#allocation8 + $0x208] sm:$0xff]
    %v1317 = vld [vmem:[#allocation8 + $0x210] sm:$0xff]
    %v1318 = vld [vmem:[#allocation8 + $0x218] sm:$0xff]
    %v1319 = vld [vmem:[#allocation8 + $0x220] sm:$0xff]
    %v1320 = vld [vmem:[#allocation8 + $0x228] sm:$0xff]
    %v1321 = vld [vmem:[#allocation8 + $0x230] sm:$0xff]
    %v1322 = vld [vmem:[#allocation8 + $0x238] sm:$0xff]
    %v1323 = vld [vmem:[#allocation8 + $0x240] sm:$0xff]
    %v1324 = vld [vmem:[#allocation8 + $0x248] sm:$0xff]
    %v1325 = vld [vmem:[#allocation8 + $0x250] sm:$0xff]
    %v1326 = vld [vmem:[#allocation8 + $0x258] sm:$0xff]
    %v1327 = vld [vmem:[#allocation8 + $0x260] sm:$0xff]
    %v1328 = vld [vmem:[#allocation8 + $0x268] sm:$0xff]
    %v1329 = vld [vmem:[#allocation8 + $0x270] sm:$0xff]
    %v1330 = vld [vmem:[#allocation8 + $0x278] sm:$0xff]
    %v1331 = vld [vmem:[#allocation8 + $0x280] sm:$0xff]
    %v1332 = vld [vmem:[#allocation8 + $0x288] sm:$0xff]
    %v1333 = vld [vmem:[#allocation8 + $0x290] sm:$0xff]
    %v1334 = vld [vmem:[#allocation8 + $0x298] sm:$0xff]
    %v1335 = vld [vmem:[#allocation8 + $0x2a0] sm:$0xff]
    %v1336 = vld [vmem:[#allocation8 + $0x2a8] sm:$0xff]
    %v1337 = vld [vmem:[#allocation8 + $0x2b0] sm:$0xff]
    %v1338 = vld [vmem:[#allocation8 + $0x2b8] sm:$0xff]
    %v1339 = vld [vmem:[#allocation8 + $0x2c0] sm:$0xff]
    %v1340 = vld [vmem:[#allocation8 + $0x2c8] sm:$0xff]
    %v1341 = vld [vmem:[#allocation8 + $0x2d0] sm:$0xff]
    %v1342 = vld [vmem:[#allocation8 + $0x2d8] sm:$0xff]
    %v1343 = vld [vmem:[#allocation8 + $0x2e0] sm:$0xff]
    %v1344 = vld [vmem:[#allocation8 + $0x2e8] sm:$0xff]
    %v1345 = vld [vmem:[#allocation8 + $0x2f0] sm:$0xff]
    %v1346 = vld [vmem:[#allocation8 + $0x2f8] sm:$0xff]
    %v1347 = vld [vmem:[#allocation8 + $0x300] sm:$0xff]
    %v1348 = vld [vmem:[#allocation8 + $0x308] sm:$0xff]
    %v1349 = vld [vmem:[#allocation8 + $0x310] sm:$0xff]
    %v1350 = vld [vmem:[#allocation8 + $0x318] sm:$0xff]
    %v1351 = vld [vmem:[#allocation8 + $0x320] sm:$0xff]
    %v1352 = vld [vmem:[#allocation8 + $0x328] sm:$0xff]
    %v1353 = vld [vmem:[#allocation8 + $0x330] sm:$0xff]
    %v1354 = vld [vmem:[#allocation8 + $0x338] sm:$0xff]
    %v1355 = vld [vmem:[#allocation8 + $0x340] sm:$0xff]
    %v1356 = vld [vmem:[#allocation8 + $0x348] sm:$0xff]
    %v1357 = vld [vmem:[#allocation8 + $0x350] sm:$0xff]
    %v1358 = vld [vmem:[#allocation8 + $0x358] sm:$0xff]
    %v1359 = vld [vmem:[#allocation8 + $0x360] sm:$0xff]
    %v1360 = vld [vmem:[#allocation8 + $0x368] sm:$0xff]
    %v1361 = vld [vmem:[#allocation8 + $0x370] sm:$0xff]
    %v1362 = vld [vmem:[#allocation8 + $0x378] sm:$0xff]
    %v1363 = vld [vmem:[#allocation8 + $0x380] sm:$0xff]
    %v1364 = vld [vmem:[#allocation8 + $0x388] sm:$0xff]
    %v1365 = vld [vmem:[#allocation8 + $0x390] sm:$0xff]
    %v1366 = vld [vmem:[#allocation8 + $0x398] sm:$0xff]
    %v1367 = vld [vmem:[#allocation8 + $0x3a0] sm:$0xff]
    %v1368 = vld [vmem:[#allocation8 + $0x3a8] sm:$0xff]
    %v1369 = vld [vmem:[#allocation8 + $0x3b0] sm:$0xff]
    %v1370 = vld [vmem:[#allocation8 + $0x3b8] sm:$0xff]
    %v1371 = vld [vmem:[#allocation8 + $0x3c0] sm:$0xff]
    %v1372 = vld [vmem:[#allocation8 + $0x3c8] sm:$0xff]
    %v1373 = vld [vmem:[#allocation8 + $0x3d0] sm:$0xff]
    %v1374 = vld [vmem:[#allocation8 + $0x3d8] sm:$0xff]
    %v1375 = vld [vmem:[#allocation8 + $0x3e0] sm:$0xff]
    %v1376 = vld [vmem:[#allocation8 + $0x3e8] sm:$0xff]
    %v1377 = vld [vmem:[#allocation8 + $0x3f0] sm:$0xff]
    %v1378 = vld [vmem:[#allocation8 + $0x3f8] sm:$0xff]
    %v1379 = vld [vmem:[#allocation8 + $0x400] sm:$0xff]
    %v1380 = vld [vmem:[#allocation8 + $0x408] sm:$0xff]
    %v1381 = vld [vmem:[#allocation8 + $0x410] sm:$0xff]
    %v1382 = vld [vmem:[#allocation8 + $0x418] sm:$0xff]
    %v1383 = vld [vmem:[#allocation8 + $0x420] sm:$0xff]
    %v1384 = vld [vmem:[#allocation8 + $0x428] sm:$0xff]
    %v1385 = vld [vmem:[#allocation8 + $0x430] sm:$0xff]
    %v1386 = vld [vmem:[#allocation8 + $0x438] sm:$0xff]
    %v1387 = vld [vmem:[#allocation8 + $0x440] sm:$0xff]
    %v1388 = vld [vmem:[#allocation8 + $0x448] sm:$0xff]
    %v1389 = vld [vmem:[#allocation8 + $0x450] sm:$0xff]
    %v1390 = vld [vmem:[#allocation8 + $0x458] sm:$0xff]
    %v1391 = vld [vmem:[#allocation8 + $0x460] sm:$0xff]
    %v1392 = vld [vmem:[#allocation8 + $0x468] sm:$0xff]
    %v1393 = vld [vmem:[#allocation8 + $0x470] sm:$0xff]
    %v1394 = vld [vmem:[#allocation8 + $0x478] sm:$0xff]
    %v1395 = vld [vmem:[#allocation8 + $0x480] sm:$0xff]
    %v1396 = vld [vmem:[#allocation8 + $0x488] sm:$0xff]
    %v1397 = vld [vmem:[#allocation8 + $0x490] sm:$0xff]
    %v1398 = vld [vmem:[#allocation8 + $0x498] sm:$0xff]
    %v1399 = vld [vmem:[#allocation8 + $0x4a0] sm:$0xff]
    %v1400 = vld [vmem:[#allocation8 + $0x4a8] sm:$0xff]
    %v1401 = vld [vmem:[#allocation8 + $0x4b0] sm:$0xff]
    %v1402 = vld [vmem:[#allocation8 + $0x4b8] sm:$0xff]
    %v1403 = vld [vmem:[#allocation8 + $0x4c0] sm:$0xff]
    %v1404 = vld [vmem:[#allocation8 + $0x4c8] sm:$0xff]
    %v1405 = vld [vmem:[#allocation8 + $0x4d0] sm:$0xff]
    %v1406 = vld [vmem:[#allocation8 + $0x4d8] sm:$0xff]
    %v1407 = vld [vmem:[#allocation8 + $0x4e0] sm:$0xff]
    %v1408 = vld [vmem:[#allocation8 + $0x4e8] sm:$0xff]
    %v1409 = vld [vmem:[#allocation8 + $0x4f0] sm:$0xff]
    %v1410 = vld [vmem:[#allocation8 + $0x4f8] sm:$0xff]
    %v1411 = vld [vmem:[#allocation8 + $0x500] sm:$0xff]
    %v1412 = vld [vmem:[#allocation8 + $0x508] sm:$0xff]
    %v1413 = vld [vmem:[#allocation8 + $0x510] sm:$0xff]
    %v1414 = vld [vmem:[#allocation8 + $0x518] sm:$0xff]
    %v1415 = vld [vmem:[#allocation8 + $0x520] sm:$0xff]
    %v1416 = vld [vmem:[#allocation8 + $0x528] sm:$0xff]
    %v1417 = vld [vmem:[#allocation8 + $0x530] sm:$0xff]
    %v1418 = vld [vmem:[#allocation8 + $0x538] sm:$0xff]
    %v1419 = vld [vmem:[#allocation8 + $0x540] sm:$0xff]
    %v1420 = vld [vmem:[#allocation8 + $0x548] sm:$0xff]
    %v1421 = vld [vmem:[#allocation8 + $0x550] sm:$0xff]
    %v1422 = vld [vmem:[#allocation8 + $0x558] sm:$0xff]
    %v1423 = vld [vmem:[#allocation8 + $0x560] sm:$0xff]
    %v1424 = vld [vmem:[#allocation8 + $0x568] sm:$0xff]
    %v1425 = vld [vmem:[#allocation8 + $0x570] sm:$0xff]
    %v1426 = vld [vmem:[#allocation8 + $0x578] sm:$0xff]
    %v1427 = vld [vmem:[#allocation8 + $0x580] sm:$0xff]
    %v1428 = vld [vmem:[#allocation8 + $0x588] sm:$0xff]
    %v1429 = vld [vmem:[#allocation8 + $0x590] sm:$0xff]
    %v1430 = vld [vmem:[#allocation8 + $0x598] sm:$0xff]
    %v1431 = vld [vmem:[#allocation8 + $0x5a0] sm:$0xff]
    %v1432 = vld [vmem:[#allocation8 + $0x5a8] sm:$0xff]
    %v1433 = vld [vmem:[#allocation8 + $0x5b0] sm:$0xff]
    %v1434 = vld [vmem:[#allocation8 + $0x5b8] sm:$0xff]
    %v1435 = vld [vmem:[#allocation8 + $0x5c0] sm:$0xff]
    %v1436 = vld [vmem:[#allocation8 + $0x5c8] sm:$0xff]
    %v1437 = vld [vmem:[#allocation8 + $0x5d0] sm:$0xff]
    %v1438 = vld [vmem:[#allocation8 + $0x5d8] sm:$0xff]
    %v1439 = vld [vmem:[#allocation8 + $0x5e0] sm:$0xff]
    %v1440 = vld [vmem:[#allocation8 + $0x5e8] sm:$0xff]
    %v1441 = vld [vmem:[#allocation8 + $0x5f0] sm:$0xff]
    %v1442 = vld [vmem:[#allocation8 + $0x5f8] sm:$0xff]
    %v1443 = vld [vmem:[#allocation8 + $0x600] sm:$0xff]
    %v1444 = vld [vmem:[#allocation8 + $0x608] sm:$0xff]
    %v1445 = vld [vmem:[#allocation8 + $0x610] sm:$0xff]
    %v1446 = vld [vmem:[#allocation8 + $0x618] sm:$0xff]
    %v1447 = vld [vmem:[#allocation8 + $0x620] sm:$0xff]
    %v1448 = vld [vmem:[#allocation8 + $0x628] sm:$0xff]
    %v1449 = vld [vmem:[#allocation8 + $0x630] sm:$0xff]
    %v1450 = vld [vmem:[#allocation8 + $0x638] sm:$0xff]
    %v1451 = vld [vmem:[#allocation8 + $0x640] sm:$0xff]
    %v1452 = vld [vmem:[#allocation8 + $0x648] sm:$0xff]
    %v1453 = vld [vmem:[#allocation8 + $0x650] sm:$0xff]
    %v1454 = vld [vmem:[#allocation8 + $0x658] sm:$0xff]
    %v1455 = vld [vmem:[#allocation8 + $0x660] sm:$0xff]
    %v1456 = vld [vmem:[#allocation8 + $0x668] sm:$0xff]
    %v1457 = vld [vmem:[#allocation8 + $0x670] sm:$0xff]
    %v1458 = vld [vmem:[#allocation8 + $0x678] sm:$0xff]
    %v1459 = vld [vmem:[#allocation8 + $0x680] sm:$0xff]
    %v1460 = vld [vmem:[#allocation8 + $0x688] sm:$0xff]
    %v1461 = vld [vmem:[#allocation8 + $0x690] sm:$0xff]
    %v1462 = vld [vmem:[#allocation8 + $0x698] sm:$0xff]
    %v1463 = vld [vmem:[#allocation8 + $0x6a0] sm:$0xff]
    %v1464 = vld [vmem:[#allocation8 + $0x6a8] sm:$0xff]
    %v1465 = vld [vmem:[#allocation8 + $0x6b0] sm:$0xff]
    %v1466 = vld [vmem:[#allocation8 + $0x6b8] sm:$0xff]
    %v1467 = vld [vmem:[#allocation8 + $0x6c0] sm:$0xff]
    %v1468 = vld [vmem:[#allocation8 + $0x6c8] sm:$0xff]
    %v1469 = vld [vmem:[#allocation8 + $0x6d0] sm:$0xff]
    %v1470 = vld [vmem:[#allocation8 + $0x6d8] sm:$0xff]
    %v1471 = vld [vmem:[#allocation8 + $0x6e0] sm:$0xff]
    %v1472 = vld [vmem:[#allocation8 + $0x6e8] sm:$0xff]
    %v1473 = vld [vmem:[#allocation8 + $0x6f0] sm:$0xff]
    %v1474 = vld [vmem:[#allocation8 + $0x6f8] sm:$0xff]
    %v1475 = vld [vmem:[#allocation8 + $0x700] sm:$0xff]
    %v1476 = vld [vmem:[#allocation8 + $0x708] sm:$0xff]
    %v1477 = vld [vmem:[#allocation8 + $0x710] sm:$0xff]
    %v1478 = vld [vmem:[#allocation8 + $0x718] sm:$0xff]
    %v1479 = vld [vmem:[#allocation8 + $0x720] sm:$0xff]
    %v1480 = vld [vmem:[#allocation8 + $0x728] sm:$0xff]
    %v1481 = vld [vmem:[#allocation8 + $0x730] sm:$0xff]
    %v1482 = vld [vmem:[#allocation8 + $0x738] sm:$0xff]
    %v1483 = vld [vmem:[#allocation8 + $0x740] sm:$0xff]
    %v1484 = vld [vmem:[#allocation8 + $0x748] sm:$0xff]
    %v1485 = vld [vmem:[#allocation8 + $0x750] sm:$0xff]
    %v1486 = vld [vmem:[#allocation8 + $0x758] sm:$0xff]
    %v1487 = vld [vmem:[#allocation8 + $0x760] sm:$0xff]
    %v1488 = vld [vmem:[#allocation8 + $0x768] sm:$0xff]
    %v1489 = vld [vmem:[#allocation8 + $0x770] sm:$0xff]
    %v1490 = vld [vmem:[#allocation8 + $0x778] sm:$0xff]
    %v1491 = vld [vmem:[#allocation8 + $0x780] sm:$0xff]
    %v1492 = vld [vmem:[#allocation8 + $0x788] sm:$0xff]
    %v1493 = vld [vmem:[#allocation8 + $0x790] sm:$0xff]
    %v1494 = vld [vmem:[#allocation8 + $0x798] sm:$0xff]
    %v1495 = vld [vmem:[#allocation8 + $0x7a0] sm:$0xff]
    %v1496 = vld [vmem:[#allocation8 + $0x7a8] sm:$0xff]
    %v1497 = vld [vmem:[#allocation8 + $0x7b0] sm:$0xff]
    %v1498 = vld [vmem:[#allocation8 + $0x7b8] sm:$0xff]
    %v1499 = vld [vmem:[#allocation8 + $0x7c0] sm:$0xff]
    %v1500 = vld [vmem:[#allocation8 + $0x7c8] sm:$0xff]
    %v1501 = vld [vmem:[#allocation8 + $0x7d0] sm:$0xff]
    %v1502 = vld [vmem:[#allocation8 + $0x7d8] sm:$0xff]
    %v1503 = vld [vmem:[#allocation8 + $0x7e0] sm:$0xff]
    %v1504 = vld [vmem:[#allocation8 + $0x7e8] sm:$0xff]
    %v1505 = vld [vmem:[#allocation8 + $0x7f0] sm:$0xff]
    %v1506 = vld [vmem:[#allocation8 + $0x7f8] sm:$0xff]
    %v1507 = vld [vmem:[#allocation8 + $0x800] sm:$0xff]
    %v1508 = vld [vmem:[#allocation8 + $0x808] sm:$0xff]
    %v1509 = vld [vmem:[#allocation8 + $0x810] sm:$0xff]
    %v1510 = vld [vmem:[#allocation8 + $0x818] sm:$0xff]
    %v1511 = vld [vmem:[#allocation8 + $0x820] sm:$0xff]
    %v1512 = vld [vmem:[#allocation8 + $0x828] sm:$0xff]
    %v1513 = vld [vmem:[#allocation8 + $0x830] sm:$0xff]
    %v1514 = vld [vmem:[#allocation8 + $0x838] sm:$0xff]
    %v1515 = vld [vmem:[#allocation8 + $0x840] sm:$0xff]
    %v1516 = vld [vmem:[#allocation8 + $0x848] sm:$0xff]
    %v1517 = vld [vmem:[#allocation8 + $0x850] sm:$0xff]
    %v1518 = vld [vmem:[#allocation8 + $0x858] sm:$0xff]
    %v1519 = vld [vmem:[#allocation8 + $0x860] sm:$0xff]
    %v1520 = vld [vmem:[#allocation8 + $0x868] sm:$0xff]
    %v1521 = vld [vmem:[#allocation8 + $0x870] sm:$0xff]
    %v1522 = vld [vmem:[#allocation8 + $0x878] sm:$0xff]
    %v1523 = vld [vmem:[#allocation8 + $0x880] sm:$0xff]
    %v1524 = vld [vmem:[#allocation8 + $0x888] sm:$0xff]
    %v1525 = vld [vmem:[#allocation8 + $0x890] sm:$0xff]
    %v1526 = vld [vmem:[#allocation8 + $0x898] sm:$0xff]
    %v1527 = vld [vmem:[#allocation8 + $0x8a0] sm:$0xff]
    %v1528 = vld [vmem:[#allocation8 + $0x8a8] sm:$0xff]
    %v1529 = vld [vmem:[#allocation8 + $0x8b0] sm:$0xff]
    %v1530 = vld [vmem:[#allocation8 + $0x8b8] sm:$0xff]
    %v1531 = vld [vmem:[#allocation8 + $0x8c0] sm:$0xff]
    %v1532 = vld [vmem:[#allocation8 + $0x8c8] sm:$0xff]
    %v1533 = vld [vmem:[#allocation8 + $0x8d0] sm:$0xff]
    %v1534 = vld [vmem:[#allocation8 + $0x8d8] sm:$0xff]
    %v1535 = vld [vmem:[#allocation8 + $0x8e0] sm:$0xff]
    %v1536 = vld [vmem:[#allocation8 + $0x8e8] sm:$0xff]
    %v1537 = vld [vmem:[#allocation8 + $0x8f0] sm:$0xff]
    %v1538 = vld [vmem:[#allocation8 + $0x8f8] sm:$0xff]
    %v1539 = vld [vmem:[#allocation10] sm:$0x3f]
    %v1541 = vlaneseq
    %v1542 = vshrl.u32 %v1541, 7
    %v1543 = vsub.s32 0, %v1542
    %v1544 = vrot.slane %v1539, %v1543
    %v1545 = vlaneseq
    %v1546 = vshrl.u32 %v1545, 7
    %v1547 = vsub.s32 1, %v1546
    %v1548 = vrot.slane %v1539, %v1547
    %v1549 = vlaneseq
    %v1550 = vshrl.u32 %v1549, 7
    %v1551 = vsub.s32 2, %v1550
    %v1552 = vrot.slane %v1539, %v1551
    %v1553 = vlaneseq
    %v1554 = vshrl.u32 %v1553, 7
    %v1555 = vsub.s32 3, %v1554
    %v1556 = vrot.slane %v1539, %v1555
    %v1557 = vlaneseq
    %v1558 = vshrl.u32 %v1557, 7
    %v1559 = vsub.s32 4, %v1558
    %v1560 = vrot.slane %v1539, %v1559
    %v1561 = vlaneseq
    %v1562 = vshrl.u32 %v1561, 7
    %v1563 = vsub.s32 5, %v1562
    %v1564 = vrot.slane %v1539, %v1563
    %v1859 = vunpack.c.l.b16 %v1251
    %v1860 = vunpack.c.h.b16 %v1251
    %v1861 = vunpack.c.l.b16 %v1252
    %v1862 = vunpack.c.h.b16 %v1252
    %v1863 = vunpack.c.l.b16 %v1253
    %v1864 = vunpack.c.h.b16 %v1253
    %v1865 = vunpack.c.l.b16 %v1254
    %v1866 = vunpack.c.h.b16 %v1254
    %v1867 = vunpack.c.l.b16 %v1255
    %v1868 = vunpack.c.h.b16 %v1255
    %v1869 = vunpack.c.l.b16 %v1256
    %v1870 = vunpack.c.h.b16 %v1256
    %v1871 = vunpack.c.l.b16 %v1257
    %v1872 = vunpack.c.h.b16 %v1257
    %v1873 = vunpack.c.l.b16 %v1258
    %v1874 = vunpack.c.h.b16 %v1258
    %v1875 = vunpack.c.l.b16 %v1259
    %v1876 = vunpack.c.h.b16 %v1259
    %v1877 = vunpack.c.l.b16 %v1260
    %v1878 = vunpack.c.h.b16 %v1260
    %v1879 = vunpack.c.l.b16 %v1261
    %v1880 = vunpack.c.h.b16 %v1261
    %v1881 = vunpack.c.l.b16 %v1262
    %v1882 = vunpack.c.h.b16 %v1262
    %v1883 = vunpack.c.l.b16 %v1263
    %v1884 = vunpack.c.h.b16 %v1263
    %v1885 = vunpack.c.l.b16 %v1264
    %v1886 = vunpack.c.h.b16 %v1264
    %v1887 = vunpack.c.l.b16 %v1265
    %v1888 = vunpack.c.h.b16 %v1265
    %v1889 = vunpack.c.l.b16 %v1266
    %v1890 = vunpack.c.h.b16 %v1266
    %v1891 = vunpack.c.l.b16 %v1267
    %v1892 = vunpack.c.h.b16 %v1267
    %v1893 = vunpack.c.l.b16 %v1268
    %v1894 = vunpack.c.h.b16 %v1268
    %v1895 = vunpack.c.l.b16 %v1269
    %v1896 = vunpack.c.h.b16 %v1269
    %v1897 = vunpack.c.l.b16 %v1270
    %v1898 = vunpack.c.h.b16 %v1270
    %v1899 = vunpack.c.l.b16 %v1271
    %v1900 = vunpack.c.h.b16 %v1271
    %v1901 = vunpack.c.l.b16 %v1272
    %v1902 = vunpack.c.h.b16 %v1272
    %v1903 = vunpack.c.l.b16 %v1273
    %v1904 = vunpack.c.h.b16 %v1273
    %v1905 = vunpack.c.l.b16 %v1274
    %v1906 = vunpack.c.h.b16 %v1274
    %v1907 = vunpack.c.l.b16 %v1275
    %v1908 = vunpack.c.h.b16 %v1275
    %v1909 = vunpack.c.l.b16 %v1276
    %v1910 = vunpack.c.h.b16 %v1276
    %v1911 = vunpack.c.l.b16 %v1277
    %v1912 = vunpack.c.h.b16 %v1277
    %v1913 = vunpack.c.l.b16 %v1278
    %v1914 = vunpack.c.h.b16 %v1278
    %v1915 = vunpack.c.l.b16 %v1279
    %v1916 = vunpack.c.h.b16 %v1279
    %v1917 = vunpack.c.l.b16 %v1280
    %v1918 = vunpack.c.h.b16 %v1280
    %v1919 = vunpack.c.l.b16 %v1281
    %v1920 = vunpack.c.h.b16 %v1281
    %v1921 = vunpack.c.l.b16 %v1282
    %v1922 = vunpack.c.h.b16 %v1282
    %v1923 = vunpack.c.l.b16 %v1283
    %v1924 = vunpack.c.h.b16 %v1283
    %v1925 = vunpack.c.l.b16 %v1284
    %v1926 = vunpack.c.h.b16 %v1284
    %v1927 = vunpack.c.l.b16 %v1285
    %v1928 = vunpack.c.h.b16 %v1285
    %v1929 = vunpack.c.l.b16 %v1286
    %v1930 = vunpack.c.h.b16 %v1286
    %v1931 = vunpack.c.l.b16 %v1287
    %v1932 = vunpack.c.h.b16 %v1287
    %v1933 = vunpack.c.l.b16 %v1288
    %v1934 = vunpack.c.h.b16 %v1288
    %v1935 = vunpack.c.l.b16 %v1289
    %v1936 = vunpack.c.h.b16 %v1289
    %v1937 = vunpack.c.l.b16 %v1290
    %v1938 = vunpack.c.h.b16 %v1290
    %v1939 = vunpack.c.l.b16 %v1291
    %v1940 = vunpack.c.h.b16 %v1291
    %v1941 = vunpack.c.l.b16 %v1292
    %v1942 = vunpack.c.h.b16 %v1292
    %v1943 = vunpack.c.l.b16 %v1293
    %v1944 = vunpack.c.h.b16 %v1293
    %v1945 = vunpack.c.l.b16 %v1294
    %v1946 = vunpack.c.h.b16 %v1294
    %v1947 = vunpack.c.l.b16 %v1295
    %v1948 = vunpack.c.h.b16 %v1295
    %v1949 = vunpack.c.l.b16 %v1296
    %v1950 = vunpack.c.h.b16 %v1296
    %v1951 = vunpack.c.l.b16 %v1297
    %v1952 = vunpack.c.h.b16 %v1297
    %v1953 = vunpack.c.l.b16 %v1298
    %v1954 = vunpack.c.h.b16 %v1298
    %v1955 = vunpack.c.l.b16 %v1299
    %v1956 = vunpack.c.h.b16 %v1299
    %v1957 = vunpack.c.l.b16 %v1300
    %v1958 = vunpack.c.h.b16 %v1300
    %v1959 = vunpack.c.l.b16 %v1301
    %v1960 = vunpack.c.h.b16 %v1301
    %v1961 = vunpack.c.l.b16 %v1302
    %v1962 = vunpack.c.h.b16 %v1302
    %v1963 = vunpack.c.l.b16 %v1303
    %v1964 = vunpack.c.h.b16 %v1303
    %v1965 = vunpack.c.l.b16 %v1304
    %v1966 = vunpack.c.h.b16 %v1304
    %v1967 = vunpack.c.l.b16 %v1305
    %v1968 = vunpack.c.h.b16 %v1305
    %v1969 = vunpack.c.l.b16 %v1306
    %v1970 = vunpack.c.h.b16 %v1306
    %v1971 = vunpack.c.l.b16 %v1307
    %v1972 = vunpack.c.h.b16 %v1307
    %v1973 = vunpack.c.l.b16 %v1308
    %v1974 = vunpack.c.h.b16 %v1308
    %v1975 = vunpack.c.l.b16 %v1309
    %v1976 = vunpack.c.h.b16 %v1309
    %v1977 = vunpack.c.l.b16 %v1310
    %v1978 = vunpack.c.h.b16 %v1310
    %v1979 = vunpack.c.l.b16 %v1311
    %v1980 = vunpack.c.h.b16 %v1311
    %v1981 = vunpack.c.l.b16 %v1312
    %v1982 = vunpack.c.h.b16 %v1312
    %v1983 = vunpack.c.l.b16 %v1313
    %v1984 = vunpack.c.h.b16 %v1313
    %v1985 = vunpack.c.l.b16 %v1314
    %v1986 = vunpack.c.h.b16 %v1314
    %v1987 = vunpack.c.l.b16 %v1315
    %v1988 = vunpack.c.h.b16 %v1315
    %v1989 = vunpack.c.l.b16 %v1316
    %v1990 = vunpack.c.h.b16 %v1316
    %v1991 = vunpack.c.l.b16 %v1317
    %v1992 = vunpack.c.h.b16 %v1317
    %v1993 = vunpack.c.l.b16 %v1318
    %v1994 = vunpack.c.h.b16 %v1318
    %v1995 = vunpack.c.l.b16 %v1319
    %v1996 = vunpack.c.h.b16 %v1319
    %v1997 = vunpack.c.l.b16 %v1320
    %v1998 = vunpack.c.h.b16 %v1320
    %v1999 = vunpack.c.l.b16 %v1321
    %v2000 = vunpack.c.h.b16 %v1321
    %v2001 = vunpack.c.l.b16 %v1322
    %v2002 = vunpack.c.h.b16 %v1322
    %v2003 = vunpack.c.l.b16 %v1323
    %v2004 = vunpack.c.h.b16 %v1323
    %v2005 = vunpack.c.l.b16 %v1324
    %v2006 = vunpack.c.h.b16 %v1324
    %v2007 = vunpack.c.l.b16 %v1325
    %v2008 = vunpack.c.h.b16 %v1325
    %v2009 = vunpack.c.l.b16 %v1326
    %v2010 = vunpack.c.h.b16 %v1326
    %v2011 = vunpack.c.l.b16 %v1327
    %v2012 = vunpack.c.h.b16 %v1327
    %v2013 = vunpack.c.l.b16 %v1328
    %v2014 = vunpack.c.h.b16 %v1328
    %v2015 = vunpack.c.l.b16 %v1329
    %v2016 = vunpack.c.h.b16 %v1329
    %v2017 = vunpack.c.l.b16 %v1330
    %v2018 = vunpack.c.h.b16 %v1330
    %v2019 = vunpack.c.l.b16 %v1331
    %v2020 = vunpack.c.h.b16 %v1331
    %v2021 = vunpack.c.l.b16 %v1332
    %v2022 = vunpack.c.h.b16 %v1332
    %v2023 = vunpack.c.l.b16 %v1333
    %v2024 = vunpack.c.h.b16 %v1333
    %v2025 = vunpack.c.l.b16 %v1334
    %v2026 = vunpack.c.h.b16 %v1334
    %v2027 = vunpack.c.l.b16 %v1335
    %v2028 = vunpack.c.h.b16 %v1335
    %v2029 = vunpack.c.l.b16 %v1336
    %v2030 = vunpack.c.h.b16 %v1336
    %v2031 = vunpack.c.l.b16 %v1337
    %v2032 = vunpack.c.h.b16 %v1337
    %v2033 = vunpack.c.l.b16 %v1338
    %v2034 = vunpack.c.h.b16 %v1338
    %v2035 = vunpack.c.l.b16 %v1339
    %v2036 = vunpack.c.h.b16 %v1339
    %v2037 = vunpack.c.l.b16 %v1340
    %v2038 = vunpack.c.h.b16 %v1340
    %v2039 = vunpack.c.l.b16 %v1341
    %v2040 = vunpack.c.h.b16 %v1341
    %v2041 = vunpack.c.l.b16 %v1342
    %v2042 = vunpack.c.h.b16 %v1342
    %v2043 = vunpack.c.l.b16 %v1343
    %v2044 = vunpack.c.h.b16 %v1343
    %v2045 = vunpack.c.l.b16 %v1344
    %v2046 = vunpack.c.h.b16 %v1344
    %v2047 = vunpack.c.l.b16 %v1345
    %v2048 = vunpack.c.h.b16 %v1345
    %v2049 = vunpack.c.l.b16 %v1346
    %v2050 = vunpack.c.h.b16 %v1346
    %v2051 = vunpack.c.l.b16 %v1347
    %v2052 = vunpack.c.h.b16 %v1347
    %v2053 = vunpack.c.l.b16 %v1348
    %v2054 = vunpack.c.h.b16 %v1348
    %v2055 = vunpack.c.l.b16 %v1349
    %v2056 = vunpack.c.h.b16 %v1349
    %v2057 = vunpack.c.l.b16 %v1350
    %v2058 = vunpack.c.h.b16 %v1350
    %v2059 = vunpack.c.l.b16 %v1351
    %v2060 = vunpack.c.h.b16 %v1351
    %v2061 = vunpack.c.l.b16 %v1352
    %v2062 = vunpack.c.h.b16 %v1352
    %v2063 = vunpack.c.l.b16 %v1353
    %v2064 = vunpack.c.h.b16 %v1353
    %v2065 = vunpack.c.l.b16 %v1354
    %v2066 = vunpack.c.h.b16 %v1354
    %v2067 = vunpack.c.l.b16 %v1355
    %v2068 = vunpack.c.h.b16 %v1355
    %v2069 = vunpack.c.l.b16 %v1356
    %v2070 = vunpack.c.h.b16 %v1356
    %v2071 = vunpack.c.l.b16 %v1357
    %v2072 = vunpack.c.h.b16 %v1357
    %v2073 = vunpack.c.l.b16 %v1358
    %v2074 = vunpack.c.h.b16 %v1358
    %v2075 = vunpack.c.l.b16 %v1359
    %v2076 = vunpack.c.h.b16 %v1359
    %v2077 = vunpack.c.l.b16 %v1360
    %v2078 = vunpack.c.h.b16 %v1360
    %v2079 = vunpack.c.l.b16 %v1361
    %v2080 = vunpack.c.h.b16 %v1361
    %v2081 = vunpack.c.l.b16 %v1362
    %v2082 = vunpack.c.h.b16 %v1362
    %v2083 = vunpack.c.l.b16 %v1363
    %v2084 = vunpack.c.h.b16 %v1363
    %v2085 = vunpack.c.l.b16 %v1364
    %v2086 = vunpack.c.h.b16 %v1364
    %v2087 = vunpack.c.l.b16 %v1365
    %v2088 = vunpack.c.h.b16 %v1365
    %v2089 = vunpack.c.l.b16 %v1366
    %v2090 = vunpack.c.h.b16 %v1366
    %v2091 = vunpack.c.l.b16 %v1367
    %v2092 = vunpack.c.h.b16 %v1367
    %v2093 = vunpack.c.l.b16 %v1368
    %v2094 = vunpack.c.h.b16 %v1368
    %v2095 = vunpack.c.l.b16 %v1369
    %v2096 = vunpack.c.h.b16 %v1369
    %v2097 = vunpack.c.l.b16 %v1370
    %v2098 = vunpack.c.h.b16 %v1370
    %v2099 = vunpack.c.l.b16 %v1371
    %v2100 = vunpack.c.h.b16 %v1371
    %v2101 = vunpack.c.l.b16 %v1372
    %v2102 = vunpack.c.h.b16 %v1372
    %v2103 = vunpack.c.l.b16 %v1373
    %v2104 = vunpack.c.h.b16 %v1373
    %v2105 = vunpack.c.l.b16 %v1374
    %v2106 = vunpack.c.h.b16 %v1374
    %v2107 = vunpack.c.l.b16 %v1375
    %v2108 = vunpack.c.h.b16 %v1375
    %v2109 = vunpack.c.l.b16 %v1376
    %v2110 = vunpack.c.h.b16 %v1376
    %v2111 = vunpack.c.l.b16 %v1377
    %v2112 = vunpack.c.h.b16 %v1377
    %v2113 = vunpack.c.l.b16 %v1378
    %v2114 = vunpack.c.h.b16 %v1378
    %v2115 = vunpack.c.l.b16 %v1379
    %v2116 = vunpack.c.h.b16 %v1379
    %v2117 = vunpack.c.l.b16 %v1380
    %v2118 = vunpack.c.h.b16 %v1380
    %v2119 = vunpack.c.l.b16 %v1381
    %v2120 = vunpack.c.h.b16 %v1381
    %v2121 = vunpack.c.l.b16 %v1382
    %v2122 = vunpack.c.h.b16 %v1382
    %v2123 = vunpack.c.l.b16 %v1383
    %v2124 = vunpack.c.h.b16 %v1383
    %v2125 = vunpack.c.l.b16 %v1384
    %v2126 = vunpack.c.h.b16 %v1384
    %v2127 = vunpack.c.l.b16 %v1385
    %v2128 = vunpack.c.h.b16 %v1385
    %v2129 = vunpack.c.l.b16 %v1386
    %v2130 = vunpack.c.h.b16 %v1386
    %v2131 = vunpack.c.l.b16 %v1387
    %v2132 = vunpack.c.h.b16 %v1387
    %v2133 = vunpack.c.l.b16 %v1388
    %v2134 = vunpack.c.h.b16 %v1388
    %v2135 = vunpack.c.l.b16 %v1389
    %v2136 = vunpack.c.h.b16 %v1389
    %v2137 = vunpack.c.l.b16 %v1390
    %v2138 = vunpack.c.h.b16 %v1390
    %v2139 = vunpack.c.l.b16 %v1391
    %v2140 = vunpack.c.h.b16 %v1391
    %v2141 = vunpack.c.l.b16 %v1392
    %v2142 = vunpack.c.h.b16 %v1392
    %v2143 = vunpack.c.l.b16 %v1393
    %v2144 = vunpack.c.h.b16 %v1393
    %v2145 = vunpack.c.l.b16 %v1394
    %v2146 = vunpack.c.h.b16 %v1394
    %v2147 = vunpack.c.l.b16 %v1395
    %v2148 = vunpack.c.h.b16 %v1395
    %v2149 = vunpack.c.l.b16 %v1396
    %v2150 = vunpack.c.h.b16 %v1396
    %v2151 = vunpack.c.l.b16 %v1397
    %v2152 = vunpack.c.h.b16 %v1397
    %v2153 = vunpack.c.l.b16 %v1398
    %v2154 = vunpack.c.h.b16 %v1398
    %v2155 = vunpack.c.l.b16 %v1399
    %v2156 = vunpack.c.h.b16 %v1399
    %v2157 = vunpack.c.l.b16 %v1400
    %v2158 = vunpack.c.h.b16 %v1400
    %v2159 = vunpack.c.l.b16 %v1401
    %v2160 = vunpack.c.h.b16 %v1401
    %v2161 = vunpack.c.l.b16 %v1402
    %v2162 = vunpack.c.h.b16 %v1402
    %v2163 = vunpack.c.l.b16 %v1403
    %v2164 = vunpack.c.h.b16 %v1403
    %v2165 = vunpack.c.l.b16 %v1404
    %v2166 = vunpack.c.h.b16 %v1404
    %v2167 = vunpack.c.l.b16 %v1405
    %v2168 = vunpack.c.h.b16 %v1405
    %v2169 = vunpack.c.l.b16 %v1406
    %v2170 = vunpack.c.h.b16 %v1406
    %v2171 = vunpack.c.l.b16 %v1407
    %v2172 = vunpack.c.h.b16 %v1407
    %v2173 = vunpack.c.l.b16 %v1408
    %v2174 = vunpack.c.h.b16 %v1408
    %v2175 = vunpack.c.l.b16 %v1409
    %v2176 = vunpack.c.h.b16 %v1409
    %v2177 = vunpack.c.l.b16 %v1410
    %v2178 = vunpack.c.h.b16 %v1410
    %v2179 = vunpack.c.l.b16 %v1411
    %v2180 = vunpack.c.h.b16 %v1411
    %v2181 = vunpack.c.l.b16 %v1412
    %v2182 = vunpack.c.h.b16 %v1412
    %v2183 = vunpack.c.l.b16 %v1413
    %v2184 = vunpack.c.h.b16 %v1413
    %v2185 = vunpack.c.l.b16 %v1414
    %v2186 = vunpack.c.h.b16 %v1414
    %v2187 = vunpack.c.l.b16 %v1415
    %v2188 = vunpack.c.h.b16 %v1415
    %v2189 = vunpack.c.l.b16 %v1416
    %v2190 = vunpack.c.h.b16 %v1416
    %v2191 = vunpack.c.l.b16 %v1417
    %v2192 = vunpack.c.h.b16 %v1417
    %v2193 = vunpack.c.l.b16 %v1418
    %v2194 = vunpack.c.h.b16 %v1418
    %v2195 = vunpack.c.l.b16 %v1419
    %v2196 = vunpack.c.h.b16 %v1419
    %v2197 = vunpack.c.l.b16 %v1420
    %v2198 = vunpack.c.h.b16 %v1420
    %v2199 = vunpack.c.l.b16 %v1421
    %v2200 = vunpack.c.h.b16 %v1421
    %v2201 = vunpack.c.l.b16 %v1422
    %v2202 = vunpack.c.h.b16 %v1422
    %v2203 = vunpack.c.l.b16 %v1423
    %v2204 = vunpack.c.h.b16 %v1423
    %v2205 = vunpack.c.l.b16 %v1424
    %v2206 = vunpack.c.h.b16 %v1424
    %v2207 = vunpack.c.l.b16 %v1425
    %v2208 = vunpack.c.h.b16 %v1425
    %v2209 = vunpack.c.l.b16 %v1426
    %v2210 = vunpack.c.h.b16 %v1426
    %v2211 = vunpack.c.l.b16 %v1427
    %v2212 = vunpack.c.h.b16 %v1427
    %v2213 = vunpack.c.l.b16 %v1428
    %v2214 = vunpack.c.h.b16 %v1428
    %v2215 = vunpack.c.l.b16 %v1429
    %v2216 = vunpack.c.h.b16 %v1429
    %v2217 = vunpack.c.l.b16 %v1430
    %v2218 = vunpack.c.h.b16 %v1430
    %v2219 = vunpack.c.l.b16 %v1431
    %v2220 = vunpack.c.h.b16 %v1431
    %v2221 = vunpack.c.l.b16 %v1432
    %v2222 = vunpack.c.h.b16 %v1432
    %v2223 = vunpack.c.l.b16 %v1433
    %v2224 = vunpack.c.h.b16 %v1433
    %v2225 = vunpack.c.l.b16 %v1434
    %v2226 = vunpack.c.h.b16 %v1434
    %v2227 = vunpack.c.l.b16 %v1435
    %v2228 = vunpack.c.h.b16 %v1435
    %v2229 = vunpack.c.l.b16 %v1436
    %v2230 = vunpack.c.h.b16 %v1436
    %v2231 = vunpack.c.l.b16 %v1437
    %v2232 = vunpack.c.h.b16 %v1437
    %v2233 = vunpack.c.l.b16 %v1438
    %v2234 = vunpack.c.h.b16 %v1438
    %v2235 = vunpack.c.l.b16 %v1439
    %v2236 = vunpack.c.h.b16 %v1439
    %v2237 = vunpack.c.l.b16 %v1440
    %v2238 = vunpack.c.h.b16 %v1440
    %v2239 = vunpack.c.l.b16 %v1441
    %v2240 = vunpack.c.h.b16 %v1441
    %v2241 = vunpack.c.l.b16 %v1442
    %v2242 = vunpack.c.h.b16 %v1442
    %v2243 = vunpack.c.l.b16 %v1443
    %v2244 = vunpack.c.h.b16 %v1443
    %v2245 = vunpack.c.l.b16 %v1444
    %v2246 = vunpack.c.h.b16 %v1444
    %v2247 = vunpack.c.l.b16 %v1445
    %v2248 = vunpack.c.h.b16 %v1445
    %v2249 = vunpack.c.l.b16 %v1446
    %v2250 = vunpack.c.h.b16 %v1446
    %v2251 = vunpack.c.l.b16 %v1447
    %v2252 = vunpack.c.h.b16 %v1447
    %v2253 = vunpack.c.l.b16 %v1448
    %v2254 = vunpack.c.h.b16 %v1448
    %v2255 = vunpack.c.l.b16 %v1449
    %v2256 = vunpack.c.h.b16 %v1449
    %v2257 = vunpack.c.l.b16 %v1450
    %v2258 = vunpack.c.h.b16 %v1450
    %v2259 = vunpack.c.l.b16 %v1451
    %v2260 = vunpack.c.h.b16 %v1451
    %v2261 = vunpack.c.l.b16 %v1452
    %v2262 = vunpack.c.h.b16 %v1452
    %v2263 = vunpack.c.l.b16 %v1453
    %v2264 = vunpack.c.h.b16 %v1453
    %v2265 = vunpack.c.l.b16 %v1454
    %v2266 = vunpack.c.h.b16 %v1454
    %v2267 = vunpack.c.l.b16 %v1455
    %v2268 = vunpack.c.h.b16 %v1455
    %v2269 = vunpack.c.l.b16 %v1456
    %v2270 = vunpack.c.h.b16 %v1456
    %v2271 = vunpack.c.l.b16 %v1457
    %v2272 = vunpack.c.h.b16 %v1457
    %v2273 = vunpack.c.l.b16 %v1458
    %v2274 = vunpack.c.h.b16 %v1458
    %v2275 = vunpack.c.l.b16 %v1459
    %v2276 = vunpack.c.h.b16 %v1459
    %v2277 = vunpack.c.l.b16 %v1460
    %v2278 = vunpack.c.h.b16 %v1460
    %v2279 = vunpack.c.l.b16 %v1461
    %v2280 = vunpack.c.h.b16 %v1461
    %v2281 = vunpack.c.l.b16 %v1462
    %v2282 = vunpack.c.h.b16 %v1462
    %v2283 = vunpack.c.l.b16 %v1463
    %v2284 = vunpack.c.h.b16 %v1463
    %v2285 = vunpack.c.l.b16 %v1464
    %v2286 = vunpack.c.h.b16 %v1464
    %v2287 = vunpack.c.l.b16 %v1465
    %v2288 = vunpack.c.h.b16 %v1465
    %v2289 = vunpack.c.l.b16 %v1466
    %v2290 = vunpack.c.h.b16 %v1466
    %v2291 = vunpack.c.l.b16 %v1467
    %v2292 = vunpack.c.h.b16 %v1467
    %v2293 = vunpack.c.l.b16 %v1468
    %v2294 = vunpack.c.h.b16 %v1468
    %v2295 = vunpack.c.l.b16 %v1469
    %v2296 = vunpack.c.h.b16 %v1469
    %v2297 = vunpack.c.l.b16 %v1470
    %v2298 = vunpack.c.h.b16 %v1470
    %v2299 = vunpack.c.l.b16 %v1471
    %v2300 = vunpack.c.h.b16 %v1471
    %v2301 = vunpack.c.l.b16 %v1472
    %v2302 = vunpack.c.h.b16 %v1472
    %v2303 = vunpack.c.l.b16 %v1473
    %v2304 = vunpack.c.h.b16 %v1473
    %v2305 = vunpack.c.l.b16 %v1474
    %v2306 = vunpack.c.h.b16 %v1474
    %v2307 = vunpack.c.l.b16 %v1475
    %v2308 = vunpack.c.h.b16 %v1475
    %v2309 = vunpack.c.l.b16 %v1476
    %v2310 = vunpack.c.h.b16 %v1476
    %v2311 = vunpack.c.l.b16 %v1477
    %v2312 = vunpack.c.h.b16 %v1477
    %v2313 = vunpack.c.l.b16 %v1478
    %v2314 = vunpack.c.h.b16 %v1478
    %v2315 = vunpack.c.l.b16 %v1479
    %v2316 = vunpack.c.h.b16 %v1479
    %v2317 = vunpack.c.l.b16 %v1480
    %v2318 = vunpack.c.h.b16 %v1480
    %v2319 = vunpack.c.l.b16 %v1481
    %v2320 = vunpack.c.h.b16 %v1481
    %v2321 = vunpack.c.l.b16 %v1482
    %v2322 = vunpack.c.h.b16 %v1482
    %v2323 = vunpack.c.l.b16 %v1483
    %v2324 = vunpack.c.h.b16 %v1483
    %v2325 = vunpack.c.l.b16 %v1484
    %v2326 = vunpack.c.h.b16 %v1484
    %v2327 = vunpack.c.l.b16 %v1485
    %v2328 = vunpack.c.h.b16 %v1485
    %v2329 = vunpack.c.l.b16 %v1486
    %v2330 = vunpack.c.h.b16 %v1486
    %v2331 = vunpack.c.l.b16 %v1487
    %v2332 = vunpack.c.h.b16 %v1487
    %v2333 = vunpack.c.l.b16 %v1488
    %v2334 = vunpack.c.h.b16 %v1488
    %v2335 = vunpack.c.l.b16 %v1489
    %v2336 = vunpack.c.h.b16 %v1489
    %v2337 = vunpack.c.l.b16 %v1490
    %v2338 = vunpack.c.h.b16 %v1490
    %v2339 = vunpack.c.l.b16 %v1491
    %v2340 = vunpack.c.h.b16 %v1491
    %v2341 = vunpack.c.l.b16 %v1492
    %v2342 = vunpack.c.h.b16 %v1492
    %v2343 = vunpack.c.l.b16 %v1493
    %v2344 = vunpack.c.h.b16 %v1493
    %v2345 = vunpack.c.l.b16 %v1494
    %v2346 = vunpack.c.h.b16 %v1494
    %v2347 = vunpack.c.l.b16 %v1495
    %v2348 = vunpack.c.h.b16 %v1495
    %v2349 = vunpack.c.l.b16 %v1496
    %v2350 = vunpack.c.h.b16 %v1496
    %v2351 = vunpack.c.l.b16 %v1497
    %v2352 = vunpack.c.h.b16 %v1497
    %v2353 = vunpack.c.l.b16 %v1498
    %v2354 = vunpack.c.h.b16 %v1498
    %v2355 = vunpack.c.l.b16 %v1499
    %v2356 = vunpack.c.h.b16 %v1499
    %v2357 = vunpack.c.l.b16 %v1500
    %v2358 = vunpack.c.h.b16 %v1500
    %v2359 = vunpack.c.l.b16 %v1501
    %v2360 = vunpack.c.h.b16 %v1501
    %v2361 = vunpack.c.l.b16 %v1502
    %v2362 = vunpack.c.h.b16 %v1502
    %v2363 = vunpack.c.l.b16 %v1503
    %v2364 = vunpack.c.h.b16 %v1503
    %v2365 = vunpack.c.l.b16 %v1504
    %v2366 = vunpack.c.h.b16 %v1504
    %v2367 = vunpack.c.l.b16 %v1505
    %v2368 = vunpack.c.h.b16 %v1505
    %v2369 = vunpack.c.l.b16 %v1506
    %v2370 = vunpack.c.h.b16 %v1506
    %v2371 = vunpack.c.l.b16 %v1507
    %v2372 = vunpack.c.h.b16 %v1507
    %v2373 = vunpack.c.l.b16 %v1508
    %v2374 = vunpack.c.h.b16 %v1508
    %v2375 = vunpack.c.l.b16 %v1509
    %v2376 = vunpack.c.h.b16 %v1509
    %v2377 = vunpack.c.l.b16 %v1510
    %v2378 = vunpack.c.h.b16 %v1510
    %v2379 = vunpack.c.l.b16 %v1511
    %v2380 = vunpack.c.h.b16 %v1511
    %v2381 = vunpack.c.l.b16 %v1512
    %v2382 = vunpack.c.h.b16 %v1512
    %v2383 = vunpack.c.l.b16 %v1513
    %v2384 = vunpack.c.h.b16 %v1513
    %v2385 = vunpack.c.l.b16 %v1514
    %v2386 = vunpack.c.h.b16 %v1514
    %v2387 = vunpack.c.l.b16 %v1515
    %v2388 = vunpack.c.h.b16 %v1515
    %v2389 = vunpack.c.l.b16 %v1516
    %v2390 = vunpack.c.h.b16 %v1516
    %v2391 = vunpack.c.l.b16 %v1517
    %v2392 = vunpack.c.h.b16 %v1517
    %v2393 = vunpack.c.l.b16 %v1518
    %v2394 = vunpack.c.h.b16 %v1518
    %v2395 = vunpack.c.l.b16 %v1519
    %v2396 = vunpack.c.h.b16 %v1519
    %v2397 = vunpack.c.l.b16 %v1520
    %v2398 = vunpack.c.h.b16 %v1520
    %v2399 = vunpack.c.l.b16 %v1521
    %v2400 = vunpack.c.h.b16 %v1521
    %v2401 = vunpack.c.l.b16 %v1522
    %v2402 = vunpack.c.h.b16 %v1522
    %v2403 = vunpack.c.l.b16 %v1523
    %v2404 = vunpack.c.h.b16 %v1523
    %v2405 = vunpack.c.l.b16 %v1524
    %v2406 = vunpack.c.h.b16 %v1524
    %v2407 = vunpack.c.l.b16 %v1525
    %v2408 = vunpack.c.h.b16 %v1525
    %v2409 = vunpack.c.l.b16 %v1526
    %v2410 = vunpack.c.h.b16 %v1526
    %v2411 = vunpack.c.l.b16 %v1527
    %v2412 = vunpack.c.h.b16 %v1527
    %v2413 = vunpack.c.l.b16 %v1528
    %v2414 = vunpack.c.h.b16 %v1528
    %v2415 = vunpack.c.l.b16 %v1529
    %v2416 = vunpack.c.h.b16 %v1529
    %v2417 = vunpack.c.l.b16 %v1530
    %v2418 = vunpack.c.h.b16 %v1530
    %v2419 = vunpack.c.l.b16 %v1531
    %v2420 = vunpack.c.h.b16 %v1531
    %v2421 = vunpack.c.l.b16 %v1532
    %v2422 = vunpack.c.h.b16 %v1532
    %v2423 = vunpack.c.l.b16 %v1533
    %v2424 = vunpack.c.h.b16 %v1533
    %v2425 = vunpack.c.l.b16 %v1534
    %v2426 = vunpack.c.h.b16 %v1534
    %v2427 = vunpack.c.l.b16 %v1535
    %v2428 = vunpack.c.h.b16 %v1535
    %v2429 = vunpack.c.l.b16 %v1536
    %v2430 = vunpack.c.h.b16 %v1536
    %v2431 = vunpack.c.l.b16 %v1537
    %v2432 = vunpack.c.h.b16 %v1537
    %v2433 = vunpack.c.l.b16 %v1538
    %v2434 = vunpack.c.h.b16 %v1538
    %v2435 = vpack.c.b16 %v1865, %v1859
    %v2436 = vpack.c.b16 %v1866, %v1860
    %v2437 = vpack.c.b16 %v1867, %v1861
    %v2438 = vpack.c.b16 %v1868, %v1862
    %v2439 = vpack.c.b16 %v1869, %v1863
    %v2440 = vpack.c.b16 %v1870, %v1864
    %v2441 = vpack.c.b16 %v1877, %v1871
    %v2442 = vpack.c.b16 %v1878, %v1872
    %v2443 = vpack.c.b16 %v1879, %v1873
    %v2444 = vpack.c.b16 %v1880, %v1874
    %v2445 = vpack.c.b16 %v1881, %v1875
    %v2446 = vpack.c.b16 %v1882, %v1876
    %v2447 = vpack.c.b16 %v1889, %v1883
    %v2448 = vpack.c.b16 %v1890, %v1884
    %v2449 = vpack.c.b16 %v1891, %v1885
    %v2450 = vpack.c.b16 %v1892, %v1886
    %v2451 = vpack.c.b16 %v1893, %v1887
    %v2452 = vpack.c.b16 %v1894, %v1888
    %v2453 = vpack.c.b16 %v1901, %v1895
    %v2454 = vpack.c.b16 %v1902, %v1896
    %v2455 = vpack.c.b16 %v1903, %v1897
    %v2456 = vpack.c.b16 %v1904, %v1898
    %v2457 = vpack.c.b16 %v1905, %v1899
    %v2458 = vpack.c.b16 %v1906, %v1900
    %v2459 = vpack.c.b16 %v1913, %v1907
    %v2460 = vpack.c.b16 %v1914, %v1908
    %v2461 = vpack.c.b16 %v1915, %v1909
    %v2462 = vpack.c.b16 %v1916, %v1910
    %v2463 = vpack.c.b16 %v1917, %v1911
    %v2464 = vpack.c.b16 %v1918, %v1912
    %v2465 = vpack.c.b16 %v1925, %v1919
    %v2466 = vpack.c.b16 %v1926, %v1920
    %v2467 = vpack.c.b16 %v1927, %v1921
    %v2468 = vpack.c.b16 %v1928, %v1922
    %v2469 = vpack.c.b16 %v1929, %v1923
    %v2470 = vpack.c.b16 %v1930, %v1924
    %v2471 = vpack.c.b16 %v1937, %v1931
    %v2472 = vpack.c.b16 %v1938, %v1932
    %v2473 = vpack.c.b16 %v1939, %v1933
    %v2474 = vpack.c.b16 %v1940, %v1934
    %v2475 = vpack.c.b16 %v1941, %v1935
    %v2476 = vpack.c.b16 %v1942, %v1936
    %v2477 = vpack.c.b16 %v1949, %v1943
    %v2478 = vpack.c.b16 %v1950, %v1944
    %v2479 = vpack.c.b16 %v1951, %v1945
    %v2480 = vpack.c.b16 %v1952, %v1946
    %v2481 = vpack.c.b16 %v1953, %v1947
    %v2482 = vpack.c.b16 %v1954, %v1948
    %v2483 = vpack.c.b16 %v1961, %v1955
    %v2484 = vpack.c.b16 %v1962, %v1956
    %v2485 = vpack.c.b16 %v1963, %v1957
    %v2486 = vpack.c.b16 %v1964, %v1958
    %v2487 = vpack.c.b16 %v1965, %v1959
    %v2488 = vpack.c.b16 %v1966, %v1960
    %v2489 = vpack.c.b16 %v1973, %v1967
    %v2490 = vpack.c.b16 %v1974, %v1968
    %v2491 = vpack.c.b16 %v1975, %v1969
    %v2492 = vpack.c.b16 %v1976, %v1970
    %v2493 = vpack.c.b16 %v1977, %v1971
    %v2494 = vpack.c.b16 %v1978, %v1972
    %v2495 = vpack.c.b16 %v1985, %v1979
    %v2496 = vpack.c.b16 %v1986, %v1980
    %v2497 = vpack.c.b16 %v1987, %v1981
    %v2498 = vpack.c.b16 %v1988, %v1982
    %v2499 = vpack.c.b16 %v1989, %v1983
    %v2500 = vpack.c.b16 %v1990, %v1984
    %v2501 = vpack.c.b16 %v1997, %v1991
    %v2502 = vpack.c.b16 %v1998, %v1992
    %v2503 = vpack.c.b16 %v1999, %v1993
    %v2504 = vpack.c.b16 %v2000, %v1994
    %v2505 = vpack.c.b16 %v2001, %v1995
    %v2506 = vpack.c.b16 %v2002, %v1996
    %v2507 = vpack.c.b16 %v2009, %v2003
    %v2508 = vpack.c.b16 %v2010, %v2004
    %v2509 = vpack.c.b16 %v2011, %v2005
    %v2510 = vpack.c.b16 %v2012, %v2006
    %v2511 = vpack.c.b16 %v2013, %v2007
    %v2512 = vpack.c.b16 %v2014, %v2008
    %v2513 = vpack.c.b16 %v2021, %v2015
    %v2514 = vpack.c.b16 %v2022, %v2016
    %v2515 = vpack.c.b16 %v2023, %v2017
    %v2516 = vpack.c.b16 %v2024, %v2018
    %v2517 = vpack.c.b16 %v2025, %v2019
    %v2518 = vpack.c.b16 %v2026, %v2020
    %v2519 = vpack.c.b16 %v2033, %v2027
    %v2520 = vpack.c.b16 %v2034, %v2028
    %v2521 = vpack.c.b16 %v2035, %v2029
    %v2522 = vpack.c.b16 %v2036, %v2030
    %v2523 = vpack.c.b16 %v2037, %v2031
    %v2524 = vpack.c.b16 %v2038, %v2032
    %v2525 = vpack.c.b16 %v2045, %v2039
    %v2526 = vpack.c.b16 %v2046, %v2040
    %v2527 = vpack.c.b16 %v2047, %v2041
    %v2528 = vpack.c.b16 %v2048, %v2042
    %v2529 = vpack.c.b16 %v2049, %v2043
    %v2530 = vpack.c.b16 %v2050, %v2044
    %v2531 = vpack.c.b16 %v2057, %v2051
    %v2532 = vpack.c.b16 %v2058, %v2052
    %v2533 = vpack.c.b16 %v2059, %v2053
    %v2534 = vpack.c.b16 %v2060, %v2054
    %v2535 = vpack.c.b16 %v2061, %v2055
    %v2536 = vpack.c.b16 %v2062, %v2056
    %v2537 = vpack.c.b16 %v2069, %v2063
    %v2538 = vpack.c.b16 %v2070, %v2064
    %v2539 = vpack.c.b16 %v2071, %v2065
    %v2540 = vpack.c.b16 %v2072, %v2066
    %v2541 = vpack.c.b16 %v2073, %v2067
    %v2542 = vpack.c.b16 %v2074, %v2068
    %v2543 = vpack.c.b16 %v2081, %v2075
    %v2544 = vpack.c.b16 %v2082, %v2076
    %v2545 = vpack.c.b16 %v2083, %v2077
    %v2546 = vpack.c.b16 %v2084, %v2078
    %v2547 = vpack.c.b16 %v2085, %v2079
    %v2548 = vpack.c.b16 %v2086, %v2080
    %v2549 = vpack.c.b16 %v2093, %v2087
    %v2550 = vpack.c.b16 %v2094, %v2088
    %v2551 = vpack.c.b16 %v2095, %v2089
    %v2552 = vpack.c.b16 %v2096, %v2090
    %v2553 = vpack.c.b16 %v2097, %v2091
    %v2554 = vpack.c.b16 %v2098, %v2092
    %v2555 = vpack.c.b16 %v2105, %v2099
    %v2556 = vpack.c.b16 %v2106, %v2100
    %v2557 = vpack.c.b16 %v2107, %v2101
    %v2558 = vpack.c.b16 %v2108, %v2102
    %v2559 = vpack.c.b16 %v2109, %v2103
    %v2560 = vpack.c.b16 %v2110, %v2104
    %v2561 = vpack.c.b16 %v2117, %v2111
    %v2562 = vpack.c.b16 %v2118, %v2112
    %v2563 = vpack.c.b16 %v2119, %v2113
    %v2564 = vpack.c.b16 %v2120, %v2114
    %v2565 = vpack.c.b16 %v2121, %v2115
    %v2566 = vpack.c.b16 %v2122, %v2116
    %v2567 = vpack.c.b16 %v2129, %v2123
    %v2568 = vpack.c.b16 %v2130, %v2124
    %v2569 = vpack.c.b16 %v2131, %v2125
    %v2570 = vpack.c.b16 %v2132, %v2126
    %v2571 = vpack.c.b16 %v2133, %v2127
    %v2572 = vpack.c.b16 %v2134, %v2128
    %v2573 = vpack.c.b16 %v2141, %v2135
    %v2574 = vpack.c.b16 %v2142, %v2136
    %v2575 = vpack.c.b16 %v2143, %v2137
    %v2576 = vpack.c.b16 %v2144, %v2138
    %v2577 = vpack.c.b16 %v2145, %v2139
    %v2578 = vpack.c.b16 %v2146, %v2140
    %v2579 = vpack.c.b16 %v2153, %v2147
    %v2580 = vpack.c.b16 %v2154, %v2148
    %v2581 = vpack.c.b16 %v2155, %v2149
    %v2582 = vpack.c.b16 %v2156, %v2150
    %v2583 = vpack.c.b16 %v2157, %v2151
    %v2584 = vpack.c.b16 %v2158, %v2152
    %v2585 = vpack.c.b16 %v2165, %v2159
    %v2586 = vpack.c.b16 %v2166, %v2160
    %v2587 = vpack.c.b16 %v2167, %v2161
    %v2588 = vpack.c.b16 %v2168, %v2162
    %v2589 = vpack.c.b16 %v2169, %v2163
    %v2590 = vpack.c.b16 %v2170, %v2164
    %v2591 = vpack.c.b16 %v2177, %v2171
    %v2592 = vpack.c.b16 %v2178, %v2172
    %v2593 = vpack.c.b16 %v2179, %v2173
    %v2594 = vpack.c.b16 %v2180, %v2174
    %v2595 = vpack.c.b16 %v2181, %v2175
    %v2596 = vpack.c.b16 %v2182, %v2176
    %v2597 = vpack.c.b16 %v2189, %v2183
    %v2598 = vpack.c.b16 %v2190, %v2184
    %v2599 = vpack.c.b16 %v2191, %v2185
    %v2600 = vpack.c.b16 %v2192, %v2186
    %v2601 = vpack.c.b16 %v2193, %v2187
    %v2602 = vpack.c.b16 %v2194, %v2188
    %v2603 = vpack.c.b16 %v2201, %v2195
    %v2604 = vpack.c.b16 %v2202, %v2196
    %v2605 = vpack.c.b16 %v2203, %v2197
    %v2606 = vpack.c.b16 %v2204, %v2198
    %v2607 = vpack.c.b16 %v2205, %v2199
    %v2608 = vpack.c.b16 %v2206, %v2200
    %v2609 = vpack.c.b16 %v2213, %v2207
    %v2610 = vpack.c.b16 %v2214, %v2208
    %v2611 = vpack.c.b16 %v2215, %v2209
    %v2612 = vpack.c.b16 %v2216, %v2210
    %v2613 = vpack.c.b16 %v2217, %v2211
    %v2614 = vpack.c.b16 %v2218, %v2212
    %v2615 = vpack.c.b16 %v2225, %v2219
    %v2616 = vpack.c.b16 %v2226, %v2220
    %v2617 = vpack.c.b16 %v2227, %v2221
    %v2618 = vpack.c.b16 %v2228, %v2222
    %v2619 = vpack.c.b16 %v2229, %v2223
    %v2620 = vpack.c.b16 %v2230, %v2224
    %v2621 = vpack.c.b16 %v2237, %v2231
    %v2622 = vpack.c.b16 %v2238, %v2232
    %v2623 = vpack.c.b16 %v2239, %v2233
    %v2624 = vpack.c.b16 %v2240, %v2234
    %v2625 = vpack.c.b16 %v2241, %v2235
    %v2626 = vpack.c.b16 %v2242, %v2236
    %v2627 = vpack.c.b16 %v2249, %v2243
    %v2628 = vpack.c.b16 %v2250, %v2244
    %v2629 = vpack.c.b16 %v2251, %v2245
    %v2630 = vpack.c.b16 %v2252, %v2246
    %v2631 = vpack.c.b16 %v2253, %v2247
    %v2632 = vpack.c.b16 %v2254, %v2248
    %v2633 = vpack.c.b16 %v2261, %v2255
    %v2634 = vpack.c.b16 %v2262, %v2256
    %v2635 = vpack.c.b16 %v2263, %v2257
    %v2636 = vpack.c.b16 %v2264, %v2258
    %v2637 = vpack.c.b16 %v2265, %v2259
    %v2638 = vpack.c.b16 %v2266, %v2260
    %v2639 = vpack.c.b16 %v2273, %v2267
    %v2640 = vpack.c.b16 %v2274, %v2268
    %v2641 = vpack.c.b16 %v2275, %v2269
    %v2642 = vpack.c.b16 %v2276, %v2270
    %v2643 = vpack.c.b16 %v2277, %v2271
    %v2644 = vpack.c.b16 %v2278, %v2272
    %v2645 = vpack.c.b16 %v2285, %v2279
    %v2646 = vpack.c.b16 %v2286, %v2280
    %v2647 = vpack.c.b16 %v2287, %v2281
    %v2648 = vpack.c.b16 %v2288, %v2282
    %v2649 = vpack.c.b16 %v2289, %v2283
    %v2650 = vpack.c.b16 %v2290, %v2284
    %v2651 = vpack.c.b16 %v2297, %v2291
    %v2652 = vpack.c.b16 %v2298, %v2292
    %v2653 = vpack.c.b16 %v2299, %v2293
    %v2654 = vpack.c.b16 %v2300, %v2294
    %v2655 = vpack.c.b16 %v2301, %v2295
    %v2656 = vpack.c.b16 %v2302, %v2296
    %v2657 = vpack.c.b16 %v2309, %v2303
    %v2658 = vpack.c.b16 %v2310, %v2304
    %v2659 = vpack.c.b16 %v2311, %v2305
    %v2660 = vpack.c.b16 %v2312, %v2306
    %v2661 = vpack.c.b16 %v2313, %v2307
    %v2662 = vpack.c.b16 %v2314, %v2308
    %v2663 = vpack.c.b16 %v2321, %v2315
    %v2664 = vpack.c.b16 %v2322, %v2316
    %v2665 = vpack.c.b16 %v2323, %v2317
    %v2666 = vpack.c.b16 %v2324, %v2318
    %v2667 = vpack.c.b16 %v2325, %v2319
    %v2668 = vpack.c.b16 %v2326, %v2320
    %v2669 = vpack.c.b16 %v2333, %v2327
    %v2670 = vpack.c.b16 %v2334, %v2328
    %v2671 = vpack.c.b16 %v2335, %v2329
    %v2672 = vpack.c.b16 %v2336, %v2330
    %v2673 = vpack.c.b16 %v2337, %v2331
    %v2674 = vpack.c.b16 %v2338, %v2332
    %v2675 = vpack.c.b16 %v2345, %v2339
    %v2676 = vpack.c.b16 %v2346, %v2340
    %v2677 = vpack.c.b16 %v2347, %v2341
    %v2678 = vpack.c.b16 %v2348, %v2342
    %v2679 = vpack.c.b16 %v2349, %v2343
    %v2680 = vpack.c.b16 %v2350, %v2344
    %v2681 = vpack.c.b16 %v2357, %v2351
    %v2682 = vpack.c.b16 %v2358, %v2352
    %v2683 = vpack.c.b16 %v2359, %v2353
    %v2684 = vpack.c.b16 %v2360, %v2354
    %v2685 = vpack.c.b16 %v2361, %v2355
    %v2686 = vpack.c.b16 %v2362, %v2356
    %v2687 = vpack.c.b16 %v2369, %v2363
    %v2688 = vpack.c.b16 %v2370, %v2364
    %v2689 = vpack.c.b16 %v2371, %v2365
    %v2690 = vpack.c.b16 %v2372, %v2366
    %v2691 = vpack.c.b16 %v2373, %v2367
    %v2692 = vpack.c.b16 %v2374, %v2368
    %v2693 = vpack.c.b16 %v2381, %v2375
    %v2694 = vpack.c.b16 %v2382, %v2376
    %v2695 = vpack.c.b16 %v2383, %v2377
    %v2696 = vpack.c.b16 %v2384, %v2378
    %v2697 = vpack.c.b16 %v2385, %v2379
    %v2698 = vpack.c.b16 %v2386, %v2380
    %v2699 = vpack.c.b16 %v2393, %v2387
    %v2700 = vpack.c.b16 %v2394, %v2388
    %v2701 = vpack.c.b16 %v2395, %v2389
    %v2702 = vpack.c.b16 %v2396, %v2390
    %v2703 = vpack.c.b16 %v2397, %v2391
    %v2704 = vpack.c.b16 %v2398, %v2392
    %v2705 = vpack.c.b16 %v2405, %v2399
    %v2706 = vpack.c.b16 %v2406, %v2400
    %v2707 = vpack.c.b16 %v2407, %v2401
    %v2708 = vpack.c.b16 %v2408, %v2402
    %v2709 = vpack.c.b16 %v2409, %v2403
    %v2710 = vpack.c.b16 %v2410, %v2404
    %v2711 = vpack.c.b16 %v2417, %v2411
    %v2712 = vpack.c.b16 %v2418, %v2412
    %v2713 = vpack.c.b16 %v2419, %v2413
    %v2714 = vpack.c.b16 %v2420, %v2414
    %v2715 = vpack.c.b16 %v2421, %v2415
    %v2716 = vpack.c.b16 %v2422, %v2416
    %v2717 = vpack.c.b16 %v2429, %v2423
    %v2718 = vpack.c.b16 %v2430, %v2424
    %v2719 = vpack.c.b16 %v2431, %v2425
    %v2720 = vpack.c.b16 %v2432, %v2426
    %v2721 = vpack.c.b16 %v2433, %v2427
    %v2722 = vpack.c.b16 %v2434, %v2428
    %3011 = vmatprep.subr.bf16.mxu0 %v2436
    %3012 = vmatpush1.bf16.msra.mxu0 %v2435
    %3013 = vmatprep.subr.bf16.mxu0 %v2442
    %3014 = vmatpush1.bf16.msra.mxu0 %v2441
    %3015 = vmatprep.subr.bf16.mxu0 %v2448
    %3016 = vmatpush1.bf16.msra.mxu0 %v2447
    %3017 = vmatprep.subr.bf16.mxu0 %v2454
    %3018 = vmatpush1.bf16.msra.mxu0 %v2453
    %3019 = vmatprep.subr.bf16.mxu0 %v2460
    %3020 = vmatpush1.bf16.msra.mxu0 %v2459
    %3021 = vmatprep.subr.bf16.mxu0 %v2466
    %3022 = vmatpush1.bf16.msra.mxu0 %v2465
    %3023 = vmatprep.subr.bf16.mxu0 %v2472
    %3024 = vmatpush1.bf16.msra.mxu0 %v2471
    %3025 = vmatprep.subr.bf16.mxu0 %v2478
    %3026 = vmatpush1.bf16.msra.mxu0 %v2477
    %3027 = vmatprep.subr.bf16.mxu0 %v2484
    %3028 = vmatpush1.bf16.msra.mxu0 %v2483
    %3029 = vmatprep.subr.bf16.mxu0 %v2490
    %3030 = vmatpush1.bf16.msra.mxu0 %v2489
    %3031 = vmatprep.subr.bf16.mxu0 %v2496
    %3032 = vmatpush1.bf16.msra.mxu0 %v2495
    %3033 = vmatprep.subr.bf16.mxu0 %v2502
    %3034 = vmatpush1.bf16.msra.mxu0 %v2501
    %3035 = vmatprep.subr.bf16.mxu0 %v2508
    %3036 = vmatpush1.bf16.msra.mxu0 %v2507
    %3037 = vmatprep.subr.bf16.mxu0 %v2514
    %3038 = vmatpush1.bf16.msra.mxu0 %v2513
    %3039 = vmatprep.subr.bf16.mxu0 %v2520
    %3040 = vmatpush1.bf16.msra.mxu0 %v2519
    %3041 = vmatprep.subr.bf16.mxu0 %v2526
    %3042 = vmatpush1.bf16.msra.mxu0 %v2525
    %3043 = vmatprep.mubr.bf16.mxu0 %v1246
    %3044 = vmatmul.mubr.bf16.gmra.mrb[0].mxu0 %v1245
    %v3045 = vpop.f32.mrb[0].mxu0
    %v3046 = vadd.f32 %v1544, %v3045
    %v3047 = vpop.f32.mrb[0].mxu0
    %v3048 = vadd.f32 %v1548, %v3047
    %v3049 = vpop.f32.mrb[0].mxu0
    %v3050 = vpop.f32.mrb[0].mxu0
    %3051 = vdwg.mxu0
    %3052 = vmatprep.subr.bf16.mxu0 %v2532
    %3053 = vmatpush1.bf16.msra.mxu0 %v2531
    %3054 = vmatprep.subr.bf16.mxu0 %v2538
    %3055 = vmatpush1.bf16.msra.mxu0 %v2537
    %3056 = vmatprep.subr.bf16.mxu0 %v2544
    %3057 = vmatpush1.bf16.msra.mxu0 %v2543
    %3058 = vmatprep.subr.bf16.mxu0 %v2550
    %3059 = vmatpush1.bf16.msra.mxu0 %v2549
    %3060 = vmatprep.subr.bf16.mxu0 %v2556
    %3061 = vmatpush1.bf16.msra.mxu0 %v2555
    %3062 = vmatprep.subr.bf16.mxu0 %v2562
    %3063 = vmatpush1.bf16.msra.mxu0 %v2561
    %3064 = vmatprep.subr.bf16.mxu0 %v2568
    %3065 = vmatpush1.bf16.msra.mxu0 %v2567
    %3066 = vmatprep.subr.bf16.mxu0 %v2574
    %3067 = vmatpush1.bf16.msra.mxu0 %v2573
    %3068 = vmatprep.subr.bf16.mxu0 %v2580
    %3069 = vmatpush1.bf16.msra.mxu0 %v2579
    %3070 = vmatprep.subr.bf16.mxu0 %v2586
    %3071 = vmatpush1.bf16.msra.mxu0 %v2585
    %3072 = vmatprep.subr.bf16.mxu0 %v2592
    %3073 = vmatpush1.bf16.msra.mxu0 %v2591
    %3074 = vmatprep.subr.bf16.mxu0 %v2598
    %3075 = vmatpush1.bf16.msra.mxu0 %v2597
    %3076 = vmatprep.subr.bf16.mxu0 %v2604
    %3077 = vmatpush1.bf16.msra.mxu0 %v2603
    %3078 = vmatprep.subr.bf16.mxu0 %v2610
    %3079 = vmatpush1.bf16.msra.mxu0 %v2609
    %3080 = vmatprep.subr.bf16.mxu0 %v2616
    %3081 = vmatpush1.bf16.msra.mxu0 %v2615
    %3082 = vmatprep.subr.bf16.mxu0 %v2622
    %3083 = vmatpush1.bf16.msra.mxu0 %v2621
    %3084 = vmatprep.mubr.bf16.mxu0 %v1248
    %3085 = vmatmul.mubr.bf16.gmra.mrb[0].mxu0 %v1247
    %v3086 = vpop.f32.mrb[0].mxu0
    %v3087 = vadd.f32 %v3046, %v3086
    %v3088 = vpop.f32.mrb[0].mxu0
    %v3089 = vadd.f32 %v3048, %v3088
    %v3090 = vpop.f32.mrb[0].mxu0
    %v3091 = vpop.f32.mrb[0].mxu0
    %3092 = vdwg.mxu0
    %3093 = vmatprep.subr.bf16.mxu0 %v2628
    %3094 = vmatpush1.bf16.msra.mxu0 %v2627
    %3095 = vmatprep.subr.bf16.mxu0 %v2634
    %3096 = vmatpush1.bf16.msra.mxu0 %v2633
    %3097 = vmatprep.subr.bf16.mxu0 %v2640
    %3098 = vmatpush1.bf16.msra.mxu0 %v2639
    %3099 = vmatprep.subr.bf16.mxu0 %v2646
    %3100 = vmatpush1.bf16.msra.mxu0 %v2645
    %3101 = vmatprep.subr.bf16.mxu0 %v2652
    %3102 = vmatpush1.bf16.msra.mxu0 %v2651
    %3103 = vmatprep.subr.bf16.mxu0 %v2658
    %3104 = vmatpush1.bf16.msra.mxu0 %v2657
    %3105 = vmatprep.subr.bf16.mxu0 %v2664
    %3106 = vmatpush1.bf16.msra.mxu0 %v2663
    %3107 = vmatprep.subr.bf16.mxu0 %v2670
    %3108 = vmatpush1.bf16.msra.mxu0 %v2669
    %3109 = vmatprep.subr.bf16.mxu0 %v2676
    %3110 = vmatpush1.bf16.msra.mxu0 %v2675
    %3111 = vmatprep.subr.bf16.mxu0 %v2682
    %3112 = vmatpush1.bf16.msra.mxu0 %v2681
    %3113 = vmatprep.subr.bf16.mxu0 %v2688
    %3114 = vmatpush1.bf16.msra.mxu0 %v2687
    %3115 = vmatprep.subr.bf16.mxu0 %v2694
    %3116 = vmatpush1.bf16.msra.mxu0 %v2693
    %3117 = vmatprep.subr.bf16.mxu0 %v2700
    %3118 = vmatpush1.bf16.msra.mxu0 %v2699
    %3119 = vmatprep.subr.bf16.mxu0 %v2706
    %3120 = vmatpush1.bf16.msra.mxu0 %v2705
    %3121 = vmatprep.subr.bf16.mxu0 %v2712
    %3122 = vmatpush1.bf16.msra.mxu0 %v2711
    %3123 = vmatprep.subr.bf16.mxu0 %v2718
    %3124 = vmatpush1.bf16.msra.mxu0 %v2717
    %3125 = vmatprep.mubr.bf16.mxu0 %v1250
    %3126 = vmatmul.mubr.bf16.gmra.mrb[0].mxu0 %v1249
    %v3127 = vpop.f32.mrb[0].mxu0
    %v3128 = vadd.f32 %v3087, %v3127
    %v3129 = vpop.f32.mrb[0].mxu0
    %v3130 = vadd.f32 %v3089, %v3129
    %v3131 = vpop.f32.mrb[0].mxu0
    %v3132 = vpop.f32.mrb[0].mxu0
    %3133 = vdwg.mxu0
    %3134 = vmatprep.subr.bf16.mxu0 %v2438
    %3135 = vmatpush1.bf16.msra.mxu0 %v2437
    %3136 = vmatprep.subr.bf16.mxu0 %v2444
    %3137 = vmatpush1.bf16.msra.mxu0 %v2443
    %3138 = vmatprep.subr.bf16.mxu0 %v2450
    %3139 = vmatpush1.bf16.msra.mxu0 %v2449
    %3140 = vmatprep.subr.bf16.mxu0 %v2456
    %3141 = vmatpush1.bf16.msra.mxu0 %v2455
    %3142 = vmatprep.subr.bf16.mxu0 %v2462
    %3143 = vmatpush1.bf16.msra.mxu0 %v2461
    %3144 = vmatprep.subr.bf16.mxu0 %v2468
    %3145 = vmatpush1.bf16.msra.mxu0 %v2467
    %3146 = vmatprep.subr.bf16.mxu0 %v2474
    %3147 = vmatpush1.bf16.msra.mxu0 %v2473
    %3148 = vmatprep.subr.bf16.mxu0 %v2480
    %3149 = vmatpush1.bf16.msra.mxu0 %v2479
    %3150 = vmatprep.subr.bf16.mxu0 %v2486
    %3151 = vmatpush1.bf16.msra.mxu0 %v2485
    %3152 = vmatprep.subr.bf16.mxu0 %v2492
    %3153 = vmatpush1.bf16.msra.mxu0 %v2491
    %3154 = vmatprep.subr.bf16.mxu0 %v2498
    %3155 = vmatpush1.bf16.msra.mxu0 %v2497
    %3156 = vmatprep.subr.bf16.mxu0 %v2504
    %3157 = vmatpush1.bf16.msra.mxu0 %v2503
    %3158 = vmatprep.subr.bf16.mxu0 %v2510
    %3159 = vmatpush1.bf16.msra.mxu0 %v2509
    %3160 = vmatprep.subr.bf16.mxu0 %v2516
    %3161 = vmatpush1.bf16.msra.mxu0 %v2515
    %3162 = vmatprep.subr.bf16.mxu0 %v2522
    %3163 = vmatpush1.bf16.msra.mxu0 %v2521
    %3164 = vmatprep.subr.bf16.mxu0 %v2528
    %3165 = vmatpush1.bf16.msra.mxu0 %v2527
    %3166 = vmatprep.mubr.bf16.mxu0 %v1246
    %3167 = vmatmul.mubr.bf16.gmra.mrb[0].mxu0 %v1245
    %v3168 = vpop.f32.mrb[0].mxu0
    %v3169 = vadd.f32 %v1552, %v3168
    %v3170 = vpop.f32.mrb[0].mxu0
    %v3171 = vadd.f32 %v1556, %v3170
    %v3172 = vpop.f32.mrb[0].mxu0
    %v3173 = vpop.f32.mrb[0].mxu0
    %3174 = vdwg.mxu0
    %3175 = vmatprep.subr.bf16.mxu0 %v2534
    %3176 = vmatpush1.bf16.msra.mxu0 %v2533
    %3177 = vmatprep.subr.bf16.mxu0 %v2540
    %3178 = vmatpush1.bf16.msra.mxu0 %v2539
    %3179 = vmatprep.subr.bf16.mxu0 %v2546
    %3180 = vmatpush1.bf16.msra.mxu0 %v2545
    %3181 = vmatprep.subr.bf16.mxu0 %v2552
    %3182 = vmatpush1.bf16.msra.mxu0 %v2551
    %3183 = vmatprep.subr.bf16.mxu0 %v2558
    %3184 = vmatpush1.bf16.msra.mxu0 %v2557
    %3185 = vmatprep.subr.bf16.mxu0 %v2564
    %3186 = vmatpush1.bf16.msra.mxu0 %v2563
    %3187 = vmatprep.subr.bf16.mxu0 %v2570
    %3188 = vmatpush1.bf16.msra.mxu0 %v2569
    %3189 = vmatprep.subr.bf16.mxu0 %v2576
    %3190 = vmatpush1.bf16.msra.mxu0 %v2575
    %3191 = vmatprep.subr.bf16.mxu0 %v2582
    %3192 = vmatpush1.bf16.msra.mxu0 %v2581
    %3193 = vmatprep.subr.bf16.mxu0 %v2588
    %3194 = vmatpush1.bf16.msra.mxu0 %v2587
    %3195 = vmatprep.subr.bf16.mxu0 %v2594
    %3196 = vmatpush1.bf16.msra.mxu0 %v2593
    %3197 = vmatprep.subr.bf16.mxu0 %v2600
    %3198 = vmatpush1.bf16.msra.mxu0 %v2599
    %3199 = vmatprep.subr.bf16.mxu0 %v2606
    %3200 = vmatpush1.bf16.msra.mxu0 %v2605
    %3201 = vmatprep.subr.bf16.mxu0 %v2612
    %3202 = vmatpush1.bf16.msra.mxu0 %v2611
    %3203 = vmatprep.subr.bf16.mxu0 %v2618
    %3204 = vmatpush1.bf16.msra.mxu0 %v2617
    %3205 = vmatprep.subr.bf16.mxu0 %v2624
    %3206 = vmatpush1.bf16.msra.mxu0 %v2623
    %3207 = vmatprep.mubr.bf16.mxu0 %v1248
    %3208 = vmatmul.mubr.bf16.gmra.mrb[0].mxu0 %v1247
    %v3209 = vpop.f32.mrb[0].mxu0
    %v3210 = vadd.f32 %v3169, %v3209
    %v3211 = vpop.f32.mrb[0].mxu0
    %v3212 = vadd.f32 %v3171, %v3211
    %v3213 = vpop.f32.mrb[0].mxu0
    %v3214 = vpop.f32.mrb[0].mxu0
    %3215 = vdwg.mxu0
    %3216 = vmatprep.subr.bf16.mxu0 %v2630
    %3217 = vmatpush1.bf16.msra.mxu0 %v2629
    %3218 = vmatprep.subr.bf16.mxu0 %v2636
    %3219 = vmatpush1.bf16.msra.mxu0 %v2635
    %3220 = vmatprep.subr.bf16.mxu0 %v2642
    %3221 = vmatpush1.bf16.msra.mxu0 %v2641
    %3222 = vmatprep.subr.bf16.mxu0 %v2648
    %3223 = vmatpush1.bf16.msra.mxu0 %v2647
    %3224 = vmatprep.subr.bf16.mxu0 %v2654
    %3225 = vmatpush1.bf16.msra.mxu0 %v2653
    %3226 = vmatprep.subr.bf16.mxu0 %v2660
    %3227 = vmatpush1.bf16.msra.mxu0 %v2659
    %3228 = vmatprep.subr.bf16.mxu0 %v2666
    %3229 = vmatpush1.bf16.msra.mxu0 %v2665
    %3230 = vmatprep.subr.bf16.mxu0 %v2672
    %3231 = vmatpush1.bf16.msra.mxu0 %v2671
    %3232 = vmatprep.subr.bf16.mxu0 %v2678
    %3233 = vmatpush1.bf16.msra.mxu0 %v2677
    %3234 = vmatprep.subr.bf16.mxu0 %v2684
    %3235 = vmatpush1.bf16.msra.mxu0 %v2683
    %3236 = vmatprep.subr.bf16.mxu0 %v2690
    %3237 = vmatpush1.bf16.msra.mxu0 %v2689
    %3238 = vmatprep.subr.bf16.mxu0 %v2696
    %3239 = vmatpush1.bf16.msra.mxu0 %v2695
    %3240 = vmatprep.subr.bf16.mxu0 %v2702
    %3241 = vmatpush1.bf16.msra.mxu0 %v2701
    %3242 = vmatprep.subr.bf16.mxu0 %v2708
    %3243 = vmatpush1.bf16.msra.mxu0 %v2707
    %3244 = vmatprep.subr.bf16.mxu0 %v2714
    %3245 = vmatpush1.bf16.msra.mxu0 %v2713
    %3246 = vmatprep.subr.bf16.mxu0 %v2720
    %3247 = vmatpush1.bf16.msra.mxu0 %v2719
    %3248 = vmatprep.mubr.bf16.mxu0 %v1250
    %3249 = vmatmul.mubr.bf16.gmra.mrb[0].mxu0 %v1249
    %v3250 = vpop.f32.mrb[0].mxu0
    %v3251 = vadd.f32 %v3210, %v3250
    %v3252 = vpop.f32.mrb[0].mxu0
    %v3253 = vadd.f32 %v3212, %v3252
    %v3254 = vpop.f32.mrb[0].mxu0
    %v3255 = vpop.f32.mrb[0].mxu0
    %3256 = vdwg.mxu0
    %3257 = vmatprep.subr.bf16.mxu0 %v2440
    %3258 = vmatpush1.bf16.msra.mxu0 %v2439
    %3259 = vmatprep.subr.bf16.mxu0 %v2446
    %3260 = vmatpush1.bf16.msra.mxu0 %v2445
    %3261 = vmatprep.subr.bf16.mxu0 %v2452
    %3262 = vmatpush1.bf16.msra.mxu0 %v2451
    %3263 = vmatprep.subr.bf16.mxu0 %v2458
    %3264 = vmatpush1.bf16.msra.mxu0 %v2457
    %3265 = vmatprep.subr.bf16.mxu0 %v2464
    %3266 = vmatpush1.bf16.msra.mxu0 %v2463
    %3267 = vmatprep.subr.bf16.mxu0 %v2470
    %3268 = vmatpush1.bf16.msra.mxu0 %v2469
    %3269 = vmatprep.subr.bf16.mxu0 %v2476
    %3270 = vmatpush1.bf16.msra.mxu0 %v2475
    %3271 = vmatprep.subr.bf16.mxu0 %v2482
    %3272 = vmatpush1.bf16.msra.mxu0 %v2481
    %3273 = vmatprep.subr.bf16.mxu0 %v2488
    %3274 = vmatpush1.bf16.msra.mxu0 %v2487
    %3275 = vmatprep.subr.bf16.mxu0 %v2494
    %3276 = vmatpush1.bf16.msra.mxu0 %v2493
    %3277 = vmatprep.subr.bf16.mxu0 %v2500
    %3278 = vmatpush1.bf16.msra.mxu0 %v2499
    %3279 = vmatprep.subr.bf16.mxu0 %v2506
    %3280 = vmatpush1.bf16.msra.mxu0 %v2505
    %3281 = vmatprep.subr.bf16.mxu0 %v2512
    %3282 = vmatpush1.bf16.msra.mxu0 %v2511
    %3283 = vmatprep.subr.bf16.mxu0 %v2518
    %3284 = vmatpush1.bf16.msra.mxu0 %v2517
    %3285 = vmatprep.subr.bf16.mxu0 %v2524
    %3286 = vmatpush1.bf16.msra.mxu0 %v2523
    %3287 = vmatprep.subr.bf16.mxu0 %v2530
    %3288 = vmatpush1.bf16.msra.mxu0 %v2529
    %3289 = vmatprep.mubr.bf16.mxu0 %v1246
    %3290 = vmatmul.mubr.bf16.gmra.mrb[0].mxu0 %v1245
    %v3291 = vpop.f32.mrb[0].mxu0
    %v3292 = vadd.f32 %v1560, %v3291
    %v3293 = vpop.f32.mrb[0].mxu0
    %v3294 = vadd.f32 %v1564, %v3293
    %v3295 = vpop.f32.mrb[0].mxu0
    %v3296 = vpop.f32.mrb[0].mxu0
    %3297 = vdwg.mxu0
    %3298 = vmatprep.subr.bf16.mxu0 %v2536
    %3299 = vmatpush1.bf16.msra.mxu0 %v2535
    %3300 = vmatprep.subr.bf16.mxu0 %v2542
    %3301 = vmatpush1.bf16.msra.mxu0 %v2541
    %3302 = vmatprep.subr.bf16.mxu0 %v2548
    %3303 = vmatpush1.bf16.msra.mxu0 %v2547
    %3304 = vmatprep.subr.bf16.mxu0 %v2554
    %3305 = vmatpush1.bf16.msra.mxu0 %v2553
    %3306 = vmatprep.subr.bf16.mxu0 %v2560
    %3307 = vmatpush1.bf16.msra.mxu0 %v2559
    %3308 = vmatprep.subr.bf16.mxu0 %v2566
    %3309 = vmatpush1.bf16.msra.mxu0 %v2565
    %3310 = vmatprep.subr.bf16.mxu0 %v2572
    %3311 = vmatpush1.bf16.msra.mxu0 %v2571
    %3312 = vmatprep.subr.bf16.mxu0 %v2578
    %3313 = vmatpush1.bf16.msra.mxu0 %v2577
    %3314 = vmatprep.subr.bf16.mxu0 %v2584
    %3315 = vmatpush1.bf16.msra.mxu0 %v2583
    %3316 = vmatprep.subr.bf16.mxu0 %v2590
    %3317 = vmatpush1.bf16.msra.mxu0 %v2589
    %3318 = vmatprep.subr.bf16.mxu0 %v2596
    %3319 = vmatpush1.bf16.msra.mxu0 %v2595
    %3320 = vmatprep.subr.bf16.mxu0 %v2602
    %3321 = vmatpush1.bf16.msra.mxu0 %v2601
    %3322 = vmatprep.subr.bf16.mxu0 %v2608
    %3323 = vmatpush1.bf16.msra.mxu0 %v2607
    %3324 = vmatprep.subr.bf16.mxu0 %v2614
    %3325 = vmatpush1.bf16.msra.mxu0 %v2613
    %3326 = vmatprep.subr.bf16.mxu0 %v2620
    %3327 = vmatpush1.bf16.msra.mxu0 %v2619
    %3328 = vmatprep.subr.bf16.mxu0 %v2626
    %3329 = vmatpush1.bf16.msra.mxu0 %v2625
    %3330 = vmatprep.mubr.bf16.mxu0 %v1248
    %3331 = vmatmul.mubr.bf16.gmra.mrb[0].mxu0 %v1247
    %v3332 = vpop.f32.mrb[0].mxu0
    %v3333 = vadd.f32 %v3292, %v3332
    %v3334 = vpop.f32.mrb[0].mxu0
    %v3335 = vadd.f32 %v3294, %v3334
    %v3336 = vpop.f32.mrb[0].mxu0
    %v3337 = vpop.f32.mrb[0].mxu0
    %3338 = vdwg.mxu0
    %3339 = vmatprep.subr.bf16.mxu0 %v2632
    %3340 = vmatpush1.bf16.msra.mxu0 %v2631
    %3341 = vmatprep.subr.bf16.mxu0 %v2638
    %3342 = vmatpush1.bf16.msra.mxu0 %v2637
    %3343 = vmatprep.subr.bf16.mxu0 %v2644
    %3344 = vmatpush1.bf16.msra.mxu0 %v2643
    %3345 = vmatprep.subr.bf16.mxu0 %v2650
    %3346 = vmatpush1.bf16.msra.mxu0 %v2649
    %3347 = vmatprep.subr.bf16.mxu0 %v2656
    %3348 = vmatpush1.bf16.msra.mxu0 %v2655
    %3349 = vmatprep.subr.bf16.mxu0 %v2662
    %3350 = vmatpush1.bf16.msra.mxu0 %v2661
    %3351 = vmatprep.subr.bf16.mxu0 %v2668
    %3352 = vmatpush1.bf16.msra.mxu0 %v2667
    %3353 = vmatprep.subr.bf16.mxu0 %v2674
    %3354 = vmatpush1.bf16.msra.mxu0 %v2673
    %3355 = vmatprep.subr.bf16.mxu0 %v2680
    %3356 = vmatpush1.bf16.msra.mxu0 %v2679
    %3357 = vmatprep.subr.bf16.mxu0 %v2686
    %3358 = vmatpush1.bf16.msra.mxu0 %v2685
    %3359 = vmatprep.subr.bf16.mxu0 %v2692
    %3360 = vmatpush1.bf16.msra.mxu0 %v2691
    %3361 = vmatprep.subr.bf16.mxu0 %v2698
    %3362 = vmatpush1.bf16.msra.mxu0 %v2697
    %3363 = vmatprep.subr.bf16.mxu0 %v2704
    %3364 = vmatpush1.bf16.msra.mxu0 %v2703
    %3365 = vmatprep.subr.bf16.mxu0 %v2710
    %3366 = vmatpush1.bf16.msra.mxu0 %v2709
    %3367 = vmatprep.subr.bf16.mxu0 %v2716
    %3368 = vmatpush1.bf16.msra.mxu0 %v2715
    %3369 = vmatprep.subr.bf16.mxu0 %v2722
    %3370 = vmatpush1.bf16.msra.mxu0 %v2721
    %3371 = vmatprep.mubr.bf16.mxu0 %v1250
    %3372 = vmatmul.mubr.bf16.gmra.mrb[0].mxu0 %v1249
    %v3373 = vpop.f32.mrb[0].mxu0
    %v3374 = vadd.f32 %v3333, %v3373
    %v3375 = vpop.f32.mrb[0].mxu0
    %v3376 = vadd.f32 %v3335, %v3375
    %v3377 = vpop.f32.mrb[0].mxu0
    %v3378 = vpop.f32.mrb[0].mxu0
    %3379 = vdwg.mxu0
    %3380 = vst [vmem:[#allocation11] sm:$0xff] %v3128
    %3381 = vst [vmem:[#allocation11 + $0x8] sm:$0xff] %v3130
    %3382 = vst [vmem:[#allocation11 + $0x10] sm:$0xff] %v3251
    %3383 = vst [vmem:[#allocation11 + $0x18] sm:$0xff] %v3253
    %3384 = vst [vmem:[#allocation11 + $0x20] sm:$0xff] %v3374
    %3385 = vst [vmem:[#allocation11 + $0x28] sm:$0xff] %v3376
    // Predicated region
    $region42: #{tpu_custom_call.1} parent=1 // pred_check
      _
    $region43: #{tpu_custom_call.1} parent=1 // pred_check_branch
      %3387 = sbr.rel (0) target = $region45
    $region44: #{tpu_custom_call.1} parent=1 // pred_region
      %s3389 = ssub.s32 768, 768
      %3390 = vsyncadd [#allocation4], %s3389
      %s3392 = sshll.u32 [#allocation11], 4
      %s3393 = int_to_ptr.vmem [resolvable:$true] %s3392
      %3395 = dma.vmem_to_hbm [thread:$0]  %s3393, 768, %s5, [#allocation4]
    $region45: #{tpu_custom_call.1} parent=1 // pred_fallthru
      _
    // Predicated region
    $region46: #{tpu_custom_call.1} parent=1 // pred_check
      _
    $region47: #{tpu_custom_call.1} parent=1 // pred_check_branch
      %3397 = sbr.rel (0) target = $region49
    $region48: #{tpu_custom_call.1} parent=1 // pred_region
      %3398 = dma.done [#allocation4], 768
    $region49: #{tpu_custom_call.1} parent=1 // pred_fallthru
      _
    %3399 = vsyncpa [#allocation3], 1
    %3400 = vsyncpa [#allocation6], 1
    %3401 = vsyncpa [#allocation9], 1
    %3402 = vsyncpa [#allocation4], 1

</llo_original>
